<compile_context>
chip_gen: v7x
topology: tpu7x:2x2x1
jax: 0.10.0
libtpu: 0.0.40
codegen_flags: <defaults>
</compile_context>

<pallas_src>
import jax
import jax.numpy as jnp
from jax import lax
from jax.experimental import pallas as pl
from jax.experimental.pallas import tpu as pltpu

PAD_C = 0   # Constants.PAD_C assumed to be 0
NUM_C = 5   # nn.Embedding(5, input_dim)


def make_rnn_kernel(num_layers, t_chunk):
    L = num_layers

    def kernel(*refs):
        # refs: xq, c_onehot, c_table, [wih_l, whh_l, b_l] * L,
        #       out_ref, x_buf (scratch), h_state (scratch)
        xq_ref, coh_ref, ctab_ref = refs[0], refs[1], refs[2]
        idx = 3
        layer_refs = []
        for _ in range(L):
            layer_refs.append((refs[idx], refs[idx + 1], refs[idx + 2]))
            idx += 3
        out_ref = refs[idx]        # (t_chunk, TB, H)
        x_buf = refs[idx + 1]      # (t_chunk, TB, D)  VMEM scratch
        h_state = refs[idx + 2]    # (L, TB, H)        VMEM scratch (persists)

        TB = out_ref.shape[1]
        H = out_ref.shape[2]

        tc = pl.program_id(1)      # time-chunk index (innermost, "arbitrary")

        @pl.when(tc == 0)
        def _():
            h_state[...] = jnp.zeros_like(h_state)   # h0 = zeros per batch tile

        # ---- x = question_emb + c_emb(c) for the whole chunk (hoisted) ------
        # c_emb lookup == sum_k onehot[..., k] * table[k]; table row PAD_C is 0.
        xq = xq_ref[...].astype(jnp.float32)          # (Tc, TB, D)
        coh = coh_ref[...].astype(jnp.float32)        # (Tc, TB, 5)
        tbl = ctab_ref[...].astype(jnp.float32)       # (5, D)
        x = xq
        for k in range(NUM_C):
            x = x + coh[:, :, k:k + 1] * tbl[k][None, None, :]
        x_buf[...] = x

        # ---- hoist weight / (pre-broadcast) bias loads out of the time loop -
        w_ih = [layer_refs[l][0][...] for l in range(L)]
        w_hh = [layer_refs[l][1][...] for l in range(L)]
        b_bc = [jnp.broadcast_to(layer_refs[l][2][...], (TB, H)) for l in range(L)]

        # ---- recurrence: hidden state carried in registers -------------------
        def step(t, h):
            inp = x_buf[t]                            # (TB, D)
            new_h = []
            for l in range(L):
                hl = jnp.tanh(
                    jnp.dot(inp, w_ih[l], preferred_element_type=jnp.float32)
                    + jnp.dot(h[l], w_hh[l], preferred_element_type=jnp.float32)
                    + b_bc[l]
                )
                new_h.append(hl)
                inp = hl
            out_ref[t] = inp.astype(out_ref.dtype)    # last-layer hidden state
            return tuple(new_h)

        h0 = tuple(h_state[l] for l in range(L))
        h_final = lax.fori_loop(0, t_chunk, step, h0)

        # write the carry back only at the chunk boundary
        for l in range(L):
            h_state[l] = h_final[l]

    return kernel


def rnn_model_pallas(question_emb, c_ids, params, *, t_chunk=128, b_tile=None):
    """question_emb: (B, T, D) f32, c_ids: (B, T) int32 in [0, 5)."""
    c_table = params["c_emb"].astype(jnp.float32)        # (5, D), row PAD_C == 0
    layer_weights = params["rnn"]                        # [(W_ih, W_hh, b)] * L
    wfc, bfc = params["fc_w"], params["fc_b"]            # (H, O), (1, O)

    B, T, D = question_emb.shape
    H = wfc.shape[0]
    L = len(layer_weights)

    # ---- padding / tiling ---------------------------------------------------
    t_chunk = max(1, min(t_chunk, T))
    T_pad = ((T + t_chunk - 1) // t_chunk) * t_chunk
    n_chunks = T_pad // t_chunk

    B8 = max(8, ((B + 7) // 8) * 8)                      # f32 sublane alignment
    if b_tile is None:
        b_tile = B8
    b_tile = min(max(8, ((b_tile + 7) // 8) * 8), B8)
    B_pad = ((B8 + b_tile - 1) // b_tile) * b_tile
    n_btiles = B_pad // b_tile

    # ---- host-side layout: time-major, padded, one-hot for the c embedding --
    xq = jnp.transpose(question_emb.astype(jnp.float32), (1, 0, 2))   # (T, B, D)
    coh = jnp.transpose(jax.nn.one_hot(c_ids, NUM_C, dtype=jnp.float32),
                        (1, 0, 2))                                    # (T, B, 5)
    xq = jnp.pad(xq, ((0, T_pad - T), (0, B_pad - B), (0, 0)))
    coh = jnp.pad(coh, ((0, T_pad - T), (0, B_pad - B), (0, 0)))      # pad -> zero emb

    # ---- specs ---------------------------------------------------------------
    in_specs = [
        pl.BlockSpec((t_chunk, b_tile, D), lambda bi, tc: (tc, bi, 0)),
        pl.BlockSpec((t_chunk, b_tile, NUM_C), lambda bi, tc: (tc, bi, 0)),
        pl.BlockSpec(c_table.shape, lambda bi, tc: (0, 0)),
    ]
    flat_weights = []
    for (wih, whh, b) in layer_weights:
        for w in (wih, whh, b):
            flat_weights.append(w)
            in_specs.append(pl.BlockSpec(w.shape, lambda bi, tc: (0, 0)))

    hid = pl.pallas_call(
        make_rnn_kernel(L, t_chunk),
        out_shape=jax.ShapeDtypeStruct((T_pad, B_pad, H), jnp.float32),
        grid_spec=pltpu.PrefetchScalarGridSpec(
            num_scalar_prefetch=0,
            grid=(n_btiles, n_chunks),                 # (parallel batch, seq time)
            in_specs=in_specs,
            out_specs=pl.BlockSpec((t_chunk, b_tile, H), lambda bi, tc: (tc, bi, 0)),
            scratch_shapes=[
                pltpu.VMEM((t_chunk, b_tile, D), jnp.float32),   # x chunk buffer
                pltpu.VMEM((L, b_tile, H), jnp.float32),         # hidden state
            ],
        ),
        compiler_params=pltpu.CompilerParams(
            dimension_semantics=("parallel", "arbitrary"),
            vmem_limit_bytes=64 * 1024 * 1024,
        ),
    )(xq, coh, c_table, *flat_weights)

    # strip padding, back to batch-first, then the fc+sigmoid head as one
    # well-shaped XLA matmul over the dense (B, T, H) slab.
    hid = jnp.transpose(hid[:T, :B, :], (1, 0, 2))       # (B, T, H)
    return jax.nn.sigmoid(hid @ wfc + bfc)               # (B, T, O)


def rnn_model_ref(question_emb, c_ids, params):
    """Pure-JAX reference mirroring the PyTorch forward."""
    correct_emb = jnp.take(params["c_emb"], c_ids, axis=0)
    x = question_emb + correct_emb                       # (B, T, D)
    B, T, _ = x.shape
    layer_weights = params["rnn"]
    L = len(layer_weights)
    H = params["fc_w"].shape[0]
    h = jnp.zeros((L, B, H), jnp.float32)
    outs = []
    for t in range(T):
        inp = x[:, t, :]
        new_h = []
        for l, (wih, whh, b) in enumerate(layer_weights):
            h_l = jnp.tanh(inp @ wih + h[l] @ whh + b)
            new_h.append(h_l)
            inp = h_l
        h = jnp.stack(new_h, axis=0)
        outs.append(inp)
    out = jnp.stack(outs, axis=1)                        # (B, T, H)
    return jax.nn.sigmoid(out @ params["fc_w"] + params["fc_b"])


def init_params(key, input_dim, hidden_dim, layer_dim, output_dim):
    """Deterministic init mirroring PyTorch shapes (weights pre-transposed)."""
    keys = jax.random.split(key, 4 * layer_dim + 4)
    k = 1.0 / jnp.sqrt(hidden_dim)

    rnn = []
    ki = 0
    for l in range(layer_dim):
        in_dim = input_dim if l == 0 else hidden_dim
        wih = jax.random.uniform(keys[ki], (in_dim, hidden_dim), jnp.float32, -k, k)
        whh = jax.random.uniform(keys[ki + 1], (hidden_dim, hidden_dim), jnp.float32, -k, k)
        b_ih = jax.random.uniform(keys[ki + 2], (1, hidden_dim), jnp.float32, -k, k)
        b_hh = jax.random.uniform(keys[ki + 3], (1, hidden_dim), jnp.float32, -k, k)
        rnn.append((wih, whh, b_ih + b_hh))              # forward-equivalent bias
        ki += 4

    c_emb = jax.random.normal(keys[ki], (NUM_C, input_dim), jnp.float32)
    c_emb = c_emb.at[PAD_C].set(0.0)                     # padding_idx row is zero
    fc_w = jax.random.uniform(keys[ki + 1], (hidden_dim, output_dim), jnp.float32, -k, k)
    fc_b = jax.random.uniform(keys[ki + 2], (1, output_dim), jnp.float32, -k, k)

    return {"rnn": rnn, "c_emb": c_emb, "fc_w": fc_w, "fc_b": fc_b}


if __name__ == "__main__":
    B, T = 12, 16
    INPUT_DIM, HIDDEN_DIM, LAYER_DIM, OUTPUT_DIM = 16, 32, 2, 8

    root = jax.random.PRNGKey(0)
    k_params, k_q, k_c = jax.random.split(root, 3)

    params = init_params(k_params, INPUT_DIM, HIDDEN_DIM, LAYER_DIM, OUTPUT_DIM)

    # Synthesized pretrain_embedding output and correctness ids.
    question_emb = jax.random.normal(k_q, (B, T, INPUT_DIM), jnp.float32)
    c_ids = jax.random.randint(k_c, (B, T), 0, NUM_C, jnp.int32)

    # t_chunk=8 -> 2 time chunks (exercises hidden-state carry across chunks);
    # b_tile=8 with B=12 -> padded B=16 -> 2 parallel batch tiles.
    res = jax.block_until_ready(
        rnn_model_pallas(question_emb, c_ids, params, t_chunk=8, b_tile=8)
    )
    ref = jax.block_until_ready(rnn_model_ref(question_emb, c_ids, params))

    assert res.shape == (B, T, OUTPUT_DIM), res.shape
    max_err = float(jnp.max(jnp.abs(res - ref)))
    assert max_err < 1e-4, max_err
    print("KERNEL_OK")
</pallas_src>

<mosaic_0001>
module attributes {stable_mosaic.version = 11 : i64} {
  func.func @kernel(%arg0: i32, %arg1: i32, %arg2: memref<8x8x16xf32, #tpu.memory_space<vmem>>, %arg3: memref<8x8x5xf32, #tpu.memory_space<vmem>>, %arg4: memref<5x16xf32, #tpu.memory_space<vmem>>, %arg5: memref<16x32xf32, #tpu.memory_space<vmem>>, %arg6: memref<32x32xf32, #tpu.memory_space<vmem>>, %arg7: memref<1x32xf32, #tpu.memory_space<vmem>>, %arg8: memref<32x32xf32, #tpu.memory_space<vmem>>, %arg9: memref<32x32xf32, #tpu.memory_space<vmem>>, %arg10: memref<1x32xf32, #tpu.memory_space<vmem>>, %arg11: memref<8x8x32xf32, #tpu.memory_space<vmem>>, %arg12: memref<8x8x16xf32, #tpu.memory_space<vmem>>, %arg13: memref<2x8x32xf32, #tpu.memory_space<vmem>>) attributes {dimension_semantics = [#tpu.dimension_semantics<parallel>, #tpu.dimension_semantics<arbitrary>], iteration_bounds = array<i64: 2, 2>, scalar_prefetch = 0 : i64, scratch_operands = 2 : i64, tpu.core_type = #tpu.core_type<tc>, window_params = [{transform_indices = @transform_0, window_bounds = array<i64: 8, 8, 16>}, {transform_indices = @transform_1, window_bounds = array<i64: 8, 8, 5>}, {pipeline_mode = #tpu.pipeline_mode<synchronous>, transform_indices = @transform_2, window_bounds = array<i64: 5, 16>}, {pipeline_mode = #tpu.pipeline_mode<synchronous>, transform_indices = @transform_3, window_bounds = array<i64: 16, 32>}, {pipeline_mode = #tpu.pipeline_mode<synchronous>, transform_indices = @transform_4, window_bounds = array<i64: 32, 32>}, {pipeline_mode = #tpu.pipeline_mode<synchronous>, transform_indices = @transform_5, window_bounds = array<i64: 1, 32>}, {pipeline_mode = #tpu.pipeline_mode<synchronous>, transform_indices = @transform_6, window_bounds = array<i64: 32, 32>}, {pipeline_mode = #tpu.pipeline_mode<synchronous>, transform_indices = @transform_7, window_bounds = array<i64: 32, 32>}, {pipeline_mode = #tpu.pipeline_mode<synchronous>, transform_indices = @transform_8, window_bounds = array<i64: 1, 32>}, {transform_indices = @transform_9, window_bounds = array<i64: 8, 8, 32>}]} {
    %c0_i32 = arith.constant 0 : i32
    %0 = arith.cmpi eq, %arg1, %c0_i32 : i32
    %1 = arith.extui %0 : i1 to i32
    %c0_i32_0 = arith.constant 0 : i32
    %2 = arith.cmpi ne, %1, %c0_i32_0 : i32
    scf.if %2 {
      %cst = arith.constant 0.000000e+00 : f32
      %69 = vector.broadcast %cst : f32 to vector<2x8x32xf32>
      %c0_36 = arith.constant 0 : index
      %c0_37 = arith.constant 0 : index
      %c0_38 = arith.constant 0 : index
      %70 = vector.load %arg13[%c0_36, %c0_37, %c0_38] : memref<2x8x32xf32, #tpu.memory_space<vmem>>, vector<2x8x32xf32>
      tpu.vector_store %arg13[%c0_36, %c0_37, %c0_38], %69 {strides = array<i32>} : memref<2x8x32xf32, #tpu.memory_space<vmem>>, vector<2x8x32xf32>,
    } else {
    }
    %c0 = arith.constant 0 : index
    %c0_1 = arith.constant 0 : index
    %c0_2 = arith.constant 0 : index
    %3 = vector.load %arg2[%c0, %c0_1, %c0_2] : memref<8x8x16xf32, #tpu.memory_space<vmem>>, vector<8x8x16xf32>
    %c0_3 = arith.constant 0 : index
    %c0_4 = arith.constant 0 : index
    %c0_5 = arith.constant 0 : index
    %4 = vector.load %arg3[%c0_3, %c0_4, %c0_5] : memref<8x8x5xf32, #tpu.memory_space<vmem>>, vector<8x8x5xf32>
    %c0_6 = arith.constant 0 : index
    %c0_7 = arith.constant 0 : index
    %5 = vector.load %arg4[%c0_6, %c0_7] : memref<5x16xf32, #tpu.memory_space<vmem>>, vector<5x16xf32>
    %6 = vector.extract_strided_slice %4 {offsets = [0, 0, 0], sizes = [8, 8, 1], strides = [1, 1, 1]} : vector<8x8x5xf32> to vector<8x8x1xf32>
    %7 = vector.extract_strided_slice %5 {offsets = [0, 0], sizes = [1, 16], strides = [1, 1]} : vector<5x16xf32> to vector<1x16xf32>
    %8 = vector.shape_cast %7 : vector<1x16xf32> to vector<16xf32>
    %9 = vector.shape_cast %8 : vector<16xf32> to vector<1x1x16xf32>
    %10 = vector.broadcast %6 : vector<8x8x1xf32> to vector<8x8x16xf32>
    %11 = vector.broadcast %9 : vector<1x1x16xf32> to vector<8x8x16xf32>
    %12 = arith.mulf %10, %11 : vector<8x8x16xf32>
    %13 = arith.addf %3, %12 : vector<8x8x16xf32>
    %14 = vector.extract_strided_slice %4 {offsets = [0, 0, 1], sizes = [8, 8, 1], strides = [1, 1, 1]} : vector<8x8x5xf32> to vector<8x8x1xf32>
    %15 = vector.extract_strided_slice %5 {offsets = [1, 0], sizes = [1, 16], strides = [1, 1]} : vector<5x16xf32> to vector<1x16xf32>
    %16 = vector.shape_cast %15 : vector<1x16xf32> to vector<16xf32>
    %17 = vector.shape_cast %16 : vector<16xf32> to vector<1x1x16xf32>
    %18 = vector.broadcast %14 : vector<8x8x1xf32> to vector<8x8x16xf32>
    %19 = vector.broadcast %17 : vector<1x1x16xf32> to vector<8x8x16xf32>
    %20 = arith.mulf %18, %19 : vector<8x8x16xf32>
    %21 = arith.addf %13, %20 : vector<8x8x16xf32>
    %22 = vector.extract_strided_slice %4 {offsets = [0, 0, 2], sizes = [8, 8, 1], strides = [1, 1, 1]} : vector<8x8x5xf32> to vector<8x8x1xf32>
    %23 = vector.extract_strided_slice %5 {offsets = [2, 0], sizes = [1, 16], strides = [1, 1]} : vector<5x16xf32> to vector<1x16xf32>
    %24 = vector.shape_cast %23 : vector<1x16xf32> to vector<16xf32>
    %25 = vector.shape_cast %24 : vector<16xf32> to vector<1x1x16xf32>
    %26 = vector.broadcast %22 : vector<8x8x1xf32> to vector<8x8x16xf32>
    %27 = vector.broadcast %25 : vector<1x1x16xf32> to vector<8x8x16xf32>
    %28 = arith.mulf %26, %27 : vector<8x8x16xf32>
    %29 = arith.addf %21, %28 : vector<8x8x16xf32>
    %30 = vector.extract_strided_slice %4 {offsets = [0, 0, 3], sizes = [8, 8, 1], strides = [1, 1, 1]} : vector<8x8x5xf32> to vector<8x8x1xf32>
    %31 = vector.extract_strided_slice %5 {offsets = [3, 0], sizes = [1, 16], strides = [1, 1]} : vector<5x16xf32> to vector<1x16xf32>
    %32 = vector.shape_cast %31 : vector<1x16xf32> to vector<16xf32>
    %33 = vector.shape_cast %32 : vector<16xf32> to vector<1x1x16xf32>
    %34 = vector.broadcast %30 : vector<8x8x1xf32> to vector<8x8x16xf32>
    %35 = vector.broadcast %33 : vector<1x1x16xf32> to vector<8x8x16xf32>
    %36 = arith.mulf %34, %35 : vector<8x8x16xf32>
    %37 = arith.addf %29, %36 : vector<8x8x16xf32>
    %38 = vector.extract_strided_slice %4 {offsets = [0, 0, 4], sizes = [8, 8, 1], strides = [1, 1, 1]} : vector<8x8x5xf32> to vector<8x8x1xf32>
    %39 = vector.extract_strided_slice %5 {offsets = [4, 0], sizes = [1, 16], strides = [1, 1]} : vector<5x16xf32> to vector<1x16xf32>
    %40 = vector.shape_cast %39 : vector<1x16xf32> to vector<16xf32>
    %41 = vector.shape_cast %40 : vector<16xf32> to vector<1x1x16xf32>
    %42 = vector.broadcast %38 : vector<8x8x1xf32> to vector<8x8x16xf32>
    %43 = vector.broadcast %41 : vector<1x1x16xf32> to vector<8x8x16xf32>
    %44 = arith.mulf %42, %43 : vector<8x8x16xf32>
    %45 = arith.addf %37, %44 : vector<8x8x16xf32>
    %c0_8 = arith.constant 0 : index
    %c0_9 = arith.constant 0 : index
    %c0_10 = arith.constant 0 : index
    %46 = vector.load %arg12[%c0_8, %c0_9, %c0_10] : memref<8x8x16xf32, #tpu.memory_space<vmem>>, vector<8x8x16xf32>
    tpu.vector_store %arg12[%c0_8, %c0_9, %c0_10], %45 {strides = array<i32>} : memref<8x8x16xf32, #tpu.memory_space<vmem>>, vector<8x8x16xf32>,
    %c0_11 = arith.constant 0 : index
    %c0_12 = arith.constant 0 : index
    %47 = vector.load %arg5[%c0_11, %c0_12] : memref<16x32xf32, #tpu.memory_space<vmem>>, vector<16x32xf32>
    %c0_13 = arith.constant 0 : index
    %c0_14 = arith.constant 0 : index
    %48 = vector.load %arg8[%c0_13, %c0_14] : memref<32x32xf32, #tpu.memory_space<vmem>>, vector<32x32xf32>
    %c0_15 = arith.constant 0 : index
    %c0_16 = arith.constant 0 : index
    %49 = vector.load %arg6[%c0_15, %c0_16] : memref<32x32xf32, #tpu.memory_space<vmem>>, vector<32x32xf32>
    %c0_17 = arith.constant 0 : index
    %c0_18 = arith.constant 0 : index
    %50 = vector.load %arg9[%c0_17, %c0_18] : memref<32x32xf32, #tpu.memory_space<vmem>>, vector<32x32xf32>
    %c0_19 = arith.constant 0 : index
    %c0_20 = arith.constant 0 : index
    %51 = vector.load %arg7[%c0_19, %c0_20] : memref<1x32xf32, #tpu.memory_space<vmem>>, vector<1x32xf32>
    %52 = vector.shape_cast %51 : vector<1x32xf32> to vector<1x32xf32>
    %53 = vector.broadcast %52 : vector<1x32xf32> to vector<8x32xf32>
    %c0_21 = arith.constant 0 : index
    %c0_22 = arith.constant 0 : index
    %54 = vector.load %arg10[%c0_21, %c0_22] : memref<1x32xf32, #tpu.memory_space<vmem>>, vector<1x32xf32>
    %55 = vector.shape_cast %54 : vector<1x32xf32> to vector<1x32xf32>
    %56 = vector.broadcast %55 : vector<1x32xf32> to vector<8x32xf32>
    %c0_23 = arith.constant 0 : index
    %c0_24 = arith.constant 0 : index
    %c0_25 = arith.constant 0 : index
    %57 = vector.load %arg13[%c0_23, %c0_24, %c0_25] : memref<2x8x32xf32, #tpu.memory_space<vmem>>, vector<1x8x32xf32>
    %58 = vector.shape_cast %57 : vector<1x8x32xf32> to vector<8x32xf32>
    %c1 = arith.constant 1 : index
    %c0_26 = arith.constant 0 : index
    %c0_27 = arith.constant 0 : index
    %59 = vector.load %arg13[%c1, %c0_26, %c0_27] : memref<2x8x32xf32, #tpu.memory_space<vmem>>, vector<1x8x32xf32>
    %60 = vector.shape_cast %59 : vector<1x8x32xf32> to vector<8x32xf32>
    %c0_i32_28 = arith.constant 0 : i32
    %c8_i32 = arith.constant 8 : i32
    %61 = arith.addi %c0_i32_28, %c8_i32 : i32
    %c1_i32 = arith.constant 1 : i32
    %62:2 = scf.for %arg14 = %c0_i32_28 to %61 step %c1_i32 iter_args(%arg15 = %58, %arg16 = %60) -> (vector<8x32xf32>, vector<8x32xf32>)  : i32 {
      %69 = arith.index_cast %arg14 : i32 to index
      %c0_36 = arith.constant 0 : index
      %c0_37 = arith.constant 0 : index
      %70 = vector.load %arg12[%69, %c0_36, %c0_37] : memref<8x8x16xf32, #tpu.memory_space<vmem>>, vector<1x8x16xf32>
      %71 = vector.shape_cast %70 : vector<1x8x16xf32> to vector<8x16xf32>
      %cst = arith.constant dense<0.000000e+00> : vector<8x32xf32>
      %72 = tpu.matmul %71, %47, %cst {dimension_numbers = #tpu.dot_dimension_numbers<[1], [0], [0], [1], [0, 0, 1, 1], [], []>} : vector<8x16xf32>, vector<16x32xf32>, vector<8x32xf32> -> vector<8x32xf32>
      %cst_38 = arith.constant dense<0.000000e+00> : vector<8x32xf32>
      %73 = tpu.matmul %arg15, %49, %cst_38 {dimension_numbers = #tpu.dot_dimension_numbers<[1], [0], [0], [1], [0, 0, 1, 1], [], []>} : vector<8x32xf32>, vector<32x32xf32>, vector<8x32xf32> -> vector<8x32xf32>
      %74 = arith.addf %72, %73 : vector<8x32xf32>
      %75 = arith.addf %74, %53 : vector<8x32xf32>
      %76 = math.tanh %75 : vector<8x32xf32>
      %cst_39 = arith.constant dense<0.000000e+00> : vector<8x32xf32>
      %77 = tpu.matmul %76, %48, %cst_39 {dimension_numbers = #tpu.dot_dimension_numbers<[1], [0], [0], [1], [0, 0, 1, 1], [], []>} : vector<8x32xf32>, vector<32x32xf32>, vector<8x32xf32> -> vector<8x32xf32>
      %cst_40 = arith.constant dense<0.000000e+00> : vector<8x32xf32>
      %78 = tpu.matmul %arg16, %50, %cst_40 {dimension_numbers = #tpu.dot_dimension_numbers<[1], [0], [0], [1], [0, 0, 1, 1], [], []>} : vector<8x32xf32>, vector<32x32xf32>, vector<8x32xf32> -> vector<8x32xf32>
      %79 = arith.addf %77, %78 : vector<8x32xf32>
      %80 = arith.addf %79, %56 : vector<8x32xf32>
      %81 = math.tanh %80 : vector<8x32xf32>
      %82 = arith.index_cast %arg14 : i32 to index
      %c0_41 = arith.constant 0 : index
      %c0_42 = arith.constant 0 : index
      %83 = vector.load %arg11[%82, %c0_41, %c0_42] : memref<8x8x32xf32, #tpu.memory_space<vmem>>, vector<1x8x32xf32>
      %84 = vector.shape_cast %83 : vector<1x8x32xf32> to vector<8x32xf32>
      %85 = vector.shape_cast %81 : vector<8x32xf32> to vector<1x8x32xf32>
      tpu.vector_store %arg11[%82, %c0_41, %c0_42], %85 {strides = array<i32>} : memref<8x8x32xf32, #tpu.memory_space<vmem>>, vector<1x8x32xf32>,
      scf.yield %76, %81 : vector<8x32xf32>, vector<8x32xf32>
    }
    %c8_i32_29 = arith.constant 8 : i32
    %c0_30 = arith.constant 0 : index
    %c0_31 = arith.constant 0 : index
    %c0_32 = arith.constant 0 : index
    %63 = vector.load %arg13[%c0_30, %c0_31, %c0_32] : memref<2x8x32xf32, #tpu.memory_space<vmem>>, vector<1x8x32xf32>
    %64 = vector.shape_cast %63 : vector<1x8x32xf32> to vector<8x32xf32>
    %65 = vector.shape_cast %62#0 : vector<8x32xf32> to vector<1x8x32xf32>
    tpu.vector_store %arg13[%c0_30, %c0_31, %c0_32], %65 {strides = array<i32>} : memref<2x8x32xf32, #tpu.memory_space<vmem>>, vector<1x8x32xf32>,
    %c1_33 = arith.constant 1 : index
    %c0_34 = arith.constant 0 : index
    %c0_35 = arith.constant 0 : index
    %66 = vector.load %arg13[%c1_33, %c0_34, %c0_35] : memref<2x8x32xf32, #tpu.memory_space<vmem>>, vector<1x8x32xf32>
    %67 = vector.shape_cast %66 : vector<1x8x32xf32> to vector<8x32xf32>
    %68 = vector.shape_cast %62#1 : vector<8x32xf32> to vector<1x8x32xf32>
    tpu.vector_store %arg13[%c1_33, %c0_34, %c0_35], %68 {strides = array<i32>} : memref<2x8x32xf32, #tpu.memory_space<vmem>>, vector<1x8x32xf32>,
    return
  }
  func.func @transform_0(%arg0: i32, %arg1: i32) -> (i32, i32, i32) {
    %c0_i32 = arith.constant 0 : i32
    %c0_i32_0 = arith.constant 0 : i32
    return %arg1, %arg0, %c0_i32 : i32, i32, i32
  }
  func.func @transform_1(%arg0: i32, %arg1: i32) -> (i32, i32, i32) {
    %c0_i32 = arith.constant 0 : i32
    %c0_i32_0 = arith.constant 0 : i32
    return %arg1, %arg0, %c0_i32 : i32, i32, i32
  }
  func.func @transform_2(%arg0: i32, %arg1: i32) -> (i32, i32) {
    %c0_i32 = arith.constant 0 : i32
    %c0_i32_0 = arith.constant 0 : i32
    %c0_i32_1 = arith.constant 0 : i32
    return %c0_i32, %c0_i32_0 : i32, i32
  }
  func.func @transform_3(%arg0: i32, %arg1: i32) -> (i32, i32) {
    %c0_i32 = arith.constant 0 : i32
    %c0_i32_0 = arith.constant 0 : i32
    %c0_i32_1 = arith.constant 0 : i32
    return %c0_i32, %c0_i32_0 : i32, i32
  }
  func.func @transform_4(%arg0: i32, %arg1: i32) -> (i32, i32) {
    %c0_i32 = arith.constant 0 : i32
    %c0_i32_0 = arith.constant 0 : i32
    %c0_i32_1 = arith.constant 0 : i32
    return %c0_i32, %c0_i32_0 : i32, i32
  }
  func.func @transform_5(%arg0: i32, %arg1: i32) -> (i32, i32) {
    %c0_i32 = arith.constant 0 : i32
    %c0_i32_0 = arith.constant 0 : i32
    %c0_i32_1 = arith.constant 0 : i32
    return %c0_i32, %c0_i32_0 : i32, i32
  }
  func.func @transform_6(%arg0: i32, %arg1: i32) -> (i32, i32) {
    %c0_i32 = arith.constant 0 : i32
    %c0_i32_0 = arith.constant 0 : i32
    %c0_i32_1 = arith.constant 0 : i32
    return %c0_i32, %c0_i32_0 : i32, i32
  }
  func.func @transform_7(%arg0: i32, %arg1: i32) -> (i32, i32) {
    %c0_i32 = arith.constant 0 : i32
    %c0_i32_0 = arith.constant 0 : i32
    %c0_i32_1 = arith.constant 0 : i32
    return %c0_i32, %c0_i32_0 : i32, i32
  }
  func.func @transform_8(%arg0: i32, %arg1: i32) -> (i32, i32) {
    %c0_i32 = arith.constant 0 : i32
    %c0_i32_0 = arith.constant 0 : i32
    %c0_i32_1 = arith.constant 0 : i32
    return %c0_i32, %c0_i32_0 : i32, i32
  }
  func.func @transform_9(%arg0: i32, %arg1: i32) -> (i32, i32, i32) {
    %c0_i32 = arith.constant 0 : i32
    %c0_i32_0 = arith.constant 0 : i32
    return %arg1, %arg0, %c0_i32 : i32, i32, i32
  }
}

</mosaic_0001>

<llo_original>
// kernel: tpu_custom_call.1
$region0: #{tpu_custom_call.1}
  #allocation0 [shape = 'u32[]', space=smem, size = 0x4, offset = 0x4, fixed_abs, tag = 'smem constant byte address 0x4 - core index']
  #allocation1 [shape = 'u32[144,128]{1,0:T(1,128)}', space=vmem, size = 0x12000, scoped, tag = 'internal scratch']
  #allocation2 [shape = 'f32[8,8,16]{2,1,0:T(8,128)}', space=vmem, size = 0x8000, scoped, tag = 'scratch operand']
  #allocation3 [shape = 'f32[2,8,32]{2,1,0:T(8,128)}', space=vmem, size = 0x2000, scoped, tag = 'scratch operand']
  %s0 = inlined_call_operand.hbm [shape: f32[16,16,16], index: 0, kind: input, shape index: {}]
  %s1 = inlined_call_operand.hbm [shape: f32[16,16,5], index: 1, kind: input, shape index: {}]
  %s2 = inlined_call_operand.hbm [shape: f32[5,16], index: 2, kind: input, shape index: {}]
  %s3 = inlined_call_operand.hbm [shape: f32[16,32], index: 3, kind: input, shape index: {}]
  %s4 = inlined_call_operand.hbm [shape: f32[32,32], index: 4, kind: input, shape index: {}]
  %s5 = inlined_call_operand.hbm [shape: f32[1,32], index: 5, kind: input, shape index: {}]
  %s6 = inlined_call_operand.hbm [shape: f32[32,32], index: 6, kind: input, shape index: {}]
  %s7 = inlined_call_operand.hbm [shape: f32[32,32], index: 7, kind: input, shape index: {}]
  %s8 = inlined_call_operand.hbm [shape: f32[1,32], index: 8, kind: input, shape index: {}]
  %s9 = inlined_call_operand.hbm [shape: f32[16,16,32], index: 9, kind: output, shape index: {}]
  %s10 = sld [smem:[#allocation0]]
  $region116: #{tpu_custom_call.1} parent=0
    _
  %s12 = ssub.s32 1, %s10
  %s13 = scalar_select 0, %s12, %s10
  $region1: #{tpu_custom_call.1} parent=0
    #allocation4 [shape = 'u8[65536]{0}', space=vmem, size = 0x10000, scoped, tag = 'input window, operand 0']
    #allocation5 [shape = 's32[2]{0}', space=sflag, size = 0x8, scoped, tag = 'scoped memory for tpu_custom_call.1']
    #allocation6 [shape = 's32[2]{0}', space=sflag, size = 0x8, scoped, tag = 'scoped memory for tpu_custom_call.1']
    #allocation7 [shape = 'u8[65536]{0}', space=vmem, size = 0x10000, scoped, tag = 'input window, operand 1']
    #allocation8 [shape = 's32[2]{0}', space=sflag, size = 0x8, scoped, tag = 'scoped memory for tpu_custom_call.1']
    #allocation9 [shape = 'u8[4096]{0}', space=vmem, size = 0x1000, scoped, tag = 'input window, operand 2, single buffered']
    #allocation10 [shape = 'u8[8192]{0}', space=vmem, size = 0x2000, scoped, tag = 'input window, operand 3, single buffered']
    #allocation11 [shape = 's32[1]{0}', space=sflag, size = 0x4, scoped, tag = 'scoped memory for tpu_custom_call.1']
    #allocation12 [shape = 'u8[16384]{0}', space=vmem, size = 0x4000, scoped, tag = 'input window, operand 4, single buffered']
    #allocation13 [shape = 'u8[512]{0}', space=vmem, size = 0x400, scoped, tag = 'input window, operand 5, single buffered']
    #allocation14 [shape = 's32[1]{0}', space=sflag, size = 0x4, scoped, tag = 'scoped memory for tpu_custom_call.1']
    #allocation15 [shape = 'u8[16384]{0}', space=vmem, size = 0x4000, scoped, tag = 'input window, operand 6, single buffered']
    #allocation16 [shape = 'u8[16384]{0}', space=vmem, size = 0x4000, scoped, tag = 'input window, operand 7, single buffered']
    #allocation17 [shape = 's32[1]{0}', space=sflag, size = 0x4, scoped, tag = 'scoped memory for tpu_custom_call.1']
    #allocation18 [shape = 'u8[512]{0}', space=vmem, size = 0x400, scoped, tag = 'input window, operand 8, single buffered']
    #allocation19 [shape = 'u8[65536]{0}', space=vmem, size = 0x10000, scoped, tag = 'output window, operand 0']
    %14 = vsyncpa [#allocation5], 0
    %s15 = scalar_lea.sflag [#allocation5], 1
    %16 = vsyncpa %s15, 0
    %17 = vsyncpa [#allocation8], 0
    %s18 = scalar_lea.sflag [#allocation8], 1
    %19 = vsyncpa %s18, 0
    %20 = vsyncpa [#allocation11], 0
    %21 = vsyncpa [#allocation14], 0
    %22 = vsyncpa [#allocation17], 0
    %23 = vsyncpa [#allocation6], 0
    %s24 = scalar_lea.sflag [#allocation6], 1
    %25 = vsyncpa %s24, 0
    loop: start=0, step=1, limit=6
    $region2: #{tpu_custom_call.1} parent=1 // loop_pre_header
      _
    $region3: #{tpu_custom_call.1} parent=1 // loop_header
      %s27 = sphi 0, %s31
      %p28 = scmp.ge.s32.totalorder %s27, 6
      %s34 = sphi 0, %s46
      %s35 = sphi 0, %s42
      %s36 = sphi 0, %s34
      %s37 = sphi 0, %s35
      %s38 = sphi 0, %s36
      %s39 = sphi 0, %s37
      %s51 = sphi 0, %s53
      %s54 = sphi 0, %s51
      %s55 = sphi 0, %s54
      %s71 = sphi 0, %s55
      %s79 = sphi 0, %s81
      %s82 = sphi 0, %s79
      %s83 = sphi 0, %s82
      %s99 = sphi 0, %s83
      %s103 = sphi 0, %s103
      %s105 = sphi 0, %s103
      %s106 = sphi 0, %s105
      %s120 = sphi 0, %s106
      %s124 = sphi 0, %s124
      %s126 = sphi 0, %s124
      %s127 = sphi 0, %s126
      %s141 = sphi 0, %s127
      %s145 = sphi 0, %s145
      %s147 = sphi 0, %s145
      %s148 = sphi 0, %s147
      %s162 = sphi 0, %s148
      %s166 = sphi 0, %s166
      %s168 = sphi 0, %s166
      %s169 = sphi 0, %s168
      %s183 = sphi 0, %s169
      %s187 = sphi 0, %s187
      %s189 = sphi 0, %s187
      %s190 = sphi 0, %s189
      %s204 = sphi 0, %s190
      %s208 = sphi 0, %s208
      %s210 = sphi 0, %s208
      %s211 = sphi 0, %s210
      %s225 = sphi 0, %s211
      %s229 = sphi 0, %s229
      %s231 = sphi 0, %s229
      %s232 = sphi 0, %s231
      %s246 = sphi 0, %s232
      %s254 = sphi 0, %s256
      %s257 = sphi 0, %s254
      %s258 = sphi 0, %s257
      %s274 = sphi 0, %s258
    $region4: #{tpu_custom_call.1} parent=1 // loop_header_branch
      %30 = sbr.rel (%p28) target = $region8
    $region5: #{tpu_custom_call.1} parent=1 // loop_body
      %s32 = ssub.s32 %s27, 1
      %s33 = ssub.s32 %s27, 2
      %s40 = sadd.s32 1, %s35
      %p41 = scmp.ge.s32.totalorder %s40, 2
      %s42 = scalar_select %p41, 0, %s40
      %s43 = sadd.s32 1, %s34
      %s44 = scalar_select %p41, %s43, %s34
      %p45 = scmp.ge.s32.totalorder %s44, 2
      %s46 = scalar_select %p45, 0, %s44
      %s47 = ssub.s32 %s35, %s42
      %s48 = ssub.s32 %s34, %s46
      %s49 = sor.u32 %s47, %s48
      %p50 = scmp.eq.s32.totalorder %s49, 0
      %s52 = sadd.s32 %s51, 1
      %s53 = scalar_select %p50, %s51, %s52
      %p56 = pneg %p50
      %p57 = scmp.eq.s32.totalorder %s27, 3
      %p58 = por %p56, %p57
      %p59 = scmp.ne.s32.totalorder %s51, %s54
      %p60 = scmp.eq.s32.totalorder %s27, 0
      %p61 = por %p59, %p60
      %p62 = scmp.ne.s32.totalorder %s51, %s54
      %p63 = scmp.eq.s32.totalorder %s32, 3
      %p64 = por %p62, %p63
      %p65 = scmp.ne.s32.totalorder %s54, %s55
      %p66 = scmp.eq.s32.totalorder %s32, 0
      %p67 = por %p65, %p66
      %p68 = scmp.ne.s32.totalorder %s54, %s55
      %p69 = scmp.eq.s32.totalorder %s33, 3
      %p70 = por %p68, %p69
      %p72 = scmp.ne.s32.totalorder %s55, %s71
      %p73 = scmp.eq.s32.totalorder %s33, 0
      %p74 = por %p72, %p73
      %s75 = ssub.s32 %s35, %s42
      %s76 = ssub.s32 %s34, %s46
      %s77 = sor.u32 %s75, %s76
      %p78 = scmp.eq.s32.totalorder %s77, 0
      %s80 = sadd.s32 %s79, 1
      %s81 = scalar_select %p78, %s79, %s80
      %p84 = pneg %p78
      %p85 = scmp.eq.s32.totalorder %s27, 3
      %p86 = por %p84, %p85
      %p87 = scmp.ne.s32.totalorder %s79, %s82
      %p88 = scmp.eq.s32.totalorder %s27, 0
      %p89 = por %p87, %p88
      %p90 = scmp.ne.s32.totalorder %s79, %s82
      %p91 = scmp.eq.s32.totalorder %s32, 3
      %p92 = por %p90, %p91
      %p93 = scmp.ne.s32.totalorder %s82, %s83
      %p94 = scmp.eq.s32.totalorder %s32, 0
      %p95 = por %p93, %p94
      %p96 = scmp.ne.s32.totalorder %s82, %s83
      %p97 = scmp.eq.s32.totalorder %s33, 3
      %p98 = por %p96, %p97
      %p100 = scmp.ne.s32.totalorder %s83, %s99
      %p101 = scmp.eq.s32.totalorder %s33, 0
      %p102 = por %p100, %p101
      %s104 = sadd.s32 %s103, 1
      %p107 = scmp.eq.s32.totalorder %s27, 3
      %p108 = scmp.ne.s32.totalorder %s103, %s105
      %p109 = scmp.eq.s32.totalorder %s27, 0
      %p110 = por %p108, %p109
      %p111 = scmp.ne.s32.totalorder %s103, %s105
      %p112 = scmp.eq.s32.totalorder %s32, 3
      %p113 = por %p111, %p112
      %p114 = scmp.ne.s32.totalorder %s105, %s106
      %p115 = scmp.eq.s32.totalorder %s32, 0
      %p116 = por %p114, %p115
      %p117 = scmp.ne.s32.totalorder %s105, %s106
      %p118 = scmp.eq.s32.totalorder %s33, 3
      %p119 = por %p117, %p118
      %p121 = scmp.ne.s32.totalorder %s106, %s120
      %p122 = scmp.eq.s32.totalorder %s33, 0
      %p123 = por %p121, %p122
      %s125 = sadd.s32 %s124, 1
      %p128 = scmp.eq.s32.totalorder %s27, 3
      %p129 = scmp.ne.s32.totalorder %s124, %s126
      %p130 = scmp.eq.s32.totalorder %s27, 0
      %p131 = por %p129, %p130
      %p132 = scmp.ne.s32.totalorder %s124, %s126
      %p133 = scmp.eq.s32.totalorder %s32, 3
      %p134 = por %p132, %p133
      %p135 = scmp.ne.s32.totalorder %s126, %s127
      %p136 = scmp.eq.s32.totalorder %s32, 0
      %p137 = por %p135, %p136
      %p138 = scmp.ne.s32.totalorder %s126, %s127
      %p139 = scmp.eq.s32.totalorder %s33, 3
      %p140 = por %p138, %p139
      %p142 = scmp.ne.s32.totalorder %s127, %s141
      %p143 = scmp.eq.s32.totalorder %s33, 0
      %p144 = por %p142, %p143
      %s146 = sadd.s32 %s145, 1
      %p149 = scmp.eq.s32.totalorder %s27, 3
      %p150 = scmp.ne.s32.totalorder %s145, %s147
      %p151 = scmp.eq.s32.totalorder %s27, 0
      %p152 = por %p150, %p151
      %p153 = scmp.ne.s32.totalorder %s145, %s147
      %p154 = scmp.eq.s32.totalorder %s32, 3
      %p155 = por %p153, %p154
      %p156 = scmp.ne.s32.totalorder %s147, %s148
      %p157 = scmp.eq.s32.totalorder %s32, 0
      %p158 = por %p156, %p157
      %p159 = scmp.ne.s32.totalorder %s147, %s148
      %p160 = scmp.eq.s32.totalorder %s33, 3
      %p161 = por %p159, %p160
      %p163 = scmp.ne.s32.totalorder %s148, %s162
      %p164 = scmp.eq.s32.totalorder %s33, 0
      %p165 = por %p163, %p164
      %s167 = sadd.s32 %s166, 1
      %p170 = scmp.eq.s32.totalorder %s27, 3
      %p171 = scmp.ne.s32.totalorder %s166, %s168
      %p172 = scmp.eq.s32.totalorder %s27, 0
      %p173 = por %p171, %p172
      %p174 = scmp.ne.s32.totalorder %s166, %s168
      %p175 = scmp.eq.s32.totalorder %s32, 3
      %p176 = por %p174, %p175
      %p177 = scmp.ne.s32.totalorder %s168, %s169
      %p178 = scmp.eq.s32.totalorder %s32, 0
      %p179 = por %p177, %p178
      %p180 = scmp.ne.s32.totalorder %s168, %s169
      %p181 = scmp.eq.s32.totalorder %s33, 3
      %p182 = por %p180, %p181
      %p184 = scmp.ne.s32.totalorder %s169, %s183
      %p185 = scmp.eq.s32.totalorder %s33, 0
      %p186 = por %p184, %p185
      %s188 = sadd.s32 %s187, 1
      %p191 = scmp.eq.s32.totalorder %s27, 3
      %p192 = scmp.ne.s32.totalorder %s187, %s189
      %p193 = scmp.eq.s32.totalorder %s27, 0
      %p194 = por %p192, %p193
      %p195 = scmp.ne.s32.totalorder %s187, %s189
      %p196 = scmp.eq.s32.totalorder %s32, 3
      %p197 = por %p195, %p196
      %p198 = scmp.ne.s32.totalorder %s189, %s190
      %p199 = scmp.eq.s32.totalorder %s32, 0
      %p200 = por %p198, %p199
      %p201 = scmp.ne.s32.totalorder %s189, %s190
      %p202 = scmp.eq.s32.totalorder %s33, 3
      %p203 = por %p201, %p202
      %p205 = scmp.ne.s32.totalorder %s190, %s204
      %p206 = scmp.eq.s32.totalorder %s33, 0
      %p207 = por %p205, %p206
      %s209 = sadd.s32 %s208, 1
      %p212 = scmp.eq.s32.totalorder %s27, 3
      %p213 = scmp.ne.s32.totalorder %s208, %s210
      %p214 = scmp.eq.s32.totalorder %s27, 0
      %p215 = por %p213, %p214
      %p216 = scmp.ne.s32.totalorder %s208, %s210
      %p217 = scmp.eq.s32.totalorder %s32, 3
      %p218 = por %p216, %p217
      %p219 = scmp.ne.s32.totalorder %s210, %s211
      %p220 = scmp.eq.s32.totalorder %s32, 0
      %p221 = por %p219, %p220
      %p222 = scmp.ne.s32.totalorder %s210, %s211
      %p223 = scmp.eq.s32.totalorder %s33, 3
      %p224 = por %p222, %p223
      %p226 = scmp.ne.s32.totalorder %s211, %s225
      %p227 = scmp.eq.s32.totalorder %s33, 0
      %p228 = por %p226, %p227
      %s230 = sadd.s32 %s229, 1
      %p233 = scmp.eq.s32.totalorder %s27, 3
      %p234 = scmp.ne.s32.totalorder %s229, %s231
      %p235 = scmp.eq.s32.totalorder %s27, 0
      %p236 = por %p234, %p235
      %p237 = scmp.ne.s32.totalorder %s229, %s231
      %p238 = scmp.eq.s32.totalorder %s32, 3
      %p239 = por %p237, %p238
      %p240 = scmp.ne.s32.totalorder %s231, %s232
      %p241 = scmp.eq.s32.totalorder %s32, 0
      %p242 = por %p240, %p241
      %p243 = scmp.ne.s32.totalorder %s231, %s232
      %p244 = scmp.eq.s32.totalorder %s33, 3
      %p245 = por %p243, %p244
      %p247 = scmp.ne.s32.totalorder %s232, %s246
      %p248 = scmp.eq.s32.totalorder %s33, 0
      %p249 = por %p247, %p248
      %s250 = ssub.s32 %s35, %s42
      %s251 = ssub.s32 %s34, %s46
      %s252 = sor.u32 %s250, %s251
      %p253 = scmp.eq.s32.totalorder %s252, 0
      %s255 = sadd.s32 %s254, 1
      %s256 = scalar_select %p253, %s254, %s255
      %p259 = pneg %p253
      %p260 = scmp.eq.s32.totalorder %s27, 3
      %p261 = por %p259, %p260
      %p262 = scmp.ne.s32.totalorder %s254, %s257
      %p263 = scmp.eq.s32.totalorder %s27, 0
      %p264 = por %p262, %p263
      %p265 = scmp.ne.s32.totalorder %s254, %s257
      %p266 = scmp.eq.s32.totalorder %s32, 3
      %p267 = por %p265, %p266
      %p268 = scmp.ne.s32.totalorder %s257, %s258
      %p269 = scmp.eq.s32.totalorder %s32, 0
      %p270 = por %p268, %p269
      %p271 = scmp.ne.s32.totalorder %s257, %s258
      %p272 = scmp.eq.s32.totalorder %s33, 3
      %p273 = por %p271, %p272
      %p275 = scmp.ne.s32.totalorder %s258, %s274
      %p276 = scmp.eq.s32.totalorder %s33, 0
      %p277 = por %p275, %p276
      %p278 = scmp.le.s32.totalorder 1, %s27
      %p279 = scmp.lt.s32.totalorder %s27, 5
      %p280 = pnand %p278, %p279
      %p281 = pneg %p280
      // Predicated region
      $region9: #{tpu_custom_call.1} parent=5 // pred_check
        _
      $region10: #{tpu_custom_call.1} parent=5 // pred_check_branch
        %283 = sbr.rel (%p280) target = $region12
      $region11: #{tpu_custom_call.1} parent=5 // pred_region
        %s284 = ssub.s32 %s27, 1
        // Predicated region
        $region13: #{tpu_custom_call.1} parent=11 // pred_check
          %p285 = pneg %p116
        $region14: #{tpu_custom_call.1} parent=11 // pred_check_branch
          %287 = sbr.rel (%p285) target = $region16
        $region15: #{tpu_custom_call.1} parent=11 // pred_region
          %s289 = ssub.s32 128, 128
          %290 = vsyncadd [#allocation8], %s289
          %s292 = sshll.u32 [#allocation9], 4
          %s293 = int_to_ptr.vmem [resolvable:$true] %s292
          %295 = dma.hbm_to_vmem [thread:$0]  %s2, 128, %s293, [#allocation8]
        $region16: #{tpu_custom_call.1} parent=11 // pred_fallthru
          _
        // Predicated region
        $region17: #{tpu_custom_call.1} parent=11 // pred_check
          %p296 = pneg %p137
        $region18: #{tpu_custom_call.1} parent=11 // pred_check_branch
          %298 = sbr.rel (%p296) target = $region20
        $region19: #{tpu_custom_call.1} parent=11 // pred_region
          %s300 = ssub.s32 256, 256
          %301 = vsyncadd [#allocation11], %s300
          %s302 = sshll.u32 [#allocation10], 4
          %s303 = int_to_ptr.vmem [resolvable:$true] %s302
          %308 = dma.hbm_to_vmem [thread:$0]  %s3, 256, %s303, [#allocation11], 128, 128, 8
        $region20: #{tpu_custom_call.1} parent=11 // pred_fallthru
          _
        // Predicated region
        $region21: #{tpu_custom_call.1} parent=11 // pred_check
          %p309 = pneg %p158
        $region22: #{tpu_custom_call.1} parent=11 // pred_check_branch
          %311 = sbr.rel (%p309) target = $region24
        $region23: #{tpu_custom_call.1} parent=11 // pred_region
          %s313 = ssub.s32 512, 512
          %314 = vsyncadd [#allocation11], %s313
          %s315 = sshll.u32 [#allocation12], 4
          %s316 = int_to_ptr.vmem [resolvable:$true] %s315
          %321 = dma.hbm_to_vmem [thread:$0]  %s4, 512, %s316, [#allocation11], 128, 128, 8
        $region24: #{tpu_custom_call.1} parent=11 // pred_fallthru
          _
        // Predicated region
        $region25: #{tpu_custom_call.1} parent=11 // pred_check
          %p322 = pneg %p179
        $region26: #{tpu_custom_call.1} parent=11 // pred_check_branch
          %324 = sbr.rel (%p322) target = $region28
        $region27: #{tpu_custom_call.1} parent=11 // pred_region
          %s326 = ssub.s32 16, 16
          %327 = vsyncadd [#allocation14], %s326
          %s329 = sshll.u32 [#allocation13], 4
          %s330 = int_to_ptr.vmem [resolvable:$true] %s329
          %332 = dma.hbm_to_vmem [thread:$0]  %s5, 16, %s330, [#allocation14]
        $region28: #{tpu_custom_call.1} parent=11 // pred_fallthru
          _
        // Predicated region
        $region29: #{tpu_custom_call.1} parent=11 // pred_check
          %p333 = pneg %p200
        $region30: #{tpu_custom_call.1} parent=11 // pred_check_branch
          %335 = sbr.rel (%p333) target = $region32
        $region31: #{tpu_custom_call.1} parent=11 // pred_region
          %s337 = ssub.s32 512, 512
          %338 = vsyncadd [#allocation14], %s337
          %s339 = sshll.u32 [#allocation15], 4
          %s340 = int_to_ptr.vmem [resolvable:$true] %s339
          %345 = dma.hbm_to_vmem [thread:$0]  %s6, 512, %s340, [#allocation14], 128, 128, 8
        $region32: #{tpu_custom_call.1} parent=11 // pred_fallthru
          _
        // Predicated region
        $region33: #{tpu_custom_call.1} parent=11 // pred_check
          %p346 = pneg %p221
        $region34: #{tpu_custom_call.1} parent=11 // pred_check_branch
          %348 = sbr.rel (%p346) target = $region36
        $region35: #{tpu_custom_call.1} parent=11 // pred_region
          %s350 = ssub.s32 512, 512
          %351 = vsyncadd [#allocation17], %s350
          %s352 = sshll.u32 [#allocation16], 4
          %s353 = int_to_ptr.vmem [resolvable:$true] %s352
          %358 = dma.hbm_to_vmem [thread:$0]  %s7, 512, %s353, [#allocation17], 128, 128, 8
        $region36: #{tpu_custom_call.1} parent=11 // pred_fallthru
          _
        // Predicated region
        $region37: #{tpu_custom_call.1} parent=11 // pred_check
          %p359 = pneg %p242
        $region38: #{tpu_custom_call.1} parent=11 // pred_check_branch
          %361 = sbr.rel (%p359) target = $region40
        $region39: #{tpu_custom_call.1} parent=11 // pred_region
          %s363 = ssub.s32 16, 16
          %364 = vsyncadd [#allocation17], %s363
          %s366 = sshll.u32 [#allocation18], 4
          %s367 = int_to_ptr.vmem [resolvable:$true] %s366
          %369 = dma.hbm_to_vmem [thread:$0]  %s8, 16, %s367, [#allocation17]
        $region40: #{tpu_custom_call.1} parent=11 // pred_fallthru
          _
      $region12: #{tpu_custom_call.1} parent=5 // pred_fallthru
        _
      %p370 = scmp.lt.s32.totalorder %s27, 4
      // Predicated region
      $region41: #{tpu_custom_call.1} parent=5 // pred_check
        %p371 = pneg %p370
      $region42: #{tpu_custom_call.1} parent=5 // pred_check_branch
        %373 = sbr.rel (%p371) target = $region44
      $region43: #{tpu_custom_call.1} parent=5 // pred_region
        // Predicated region
        $region45: #{tpu_custom_call.1} parent=43 // pred_check
          %p374 = pneg %p61
        $region46: #{tpu_custom_call.1} parent=43 // pred_check_branch
          %376 = sbr.rel (%p374) target = $region48
        $region47: #{tpu_custom_call.1} parent=43 // pred_region
          %s377 = sand.u32 %s51, 1
          %s378 = scalar_lea.sflag [#allocation5], %s377
          %s379 = sand.u32 %s51, 1
          %s380 = smul.addr %s379, 64
          %s381 = scalar_lea.vmem [#allocation4], %s380
          %s382 = smul.u32 8, %s35
          %s384 = ssub.s32 1024, 1024
          %385 = vsyncadd %s378, %s384
          %s386 = smul.addr %s382, 2
          %s387 = sadd.s32 %s34, %s386
          %s388 = smul.addr %s387, 128
          %s389 = scalar_lea.hbm %s0, %s388
          %s390 = sshll.u32 %s381, 4
          %s391 = int_to_ptr.vmem [resolvable:$true] %s390
          %396 = dma.hbm_to_vmem [thread:$0]  %s389, 1024, %s391, %s378, 256, 128, 8
        $region48: #{tpu_custom_call.1} parent=43 // pred_fallthru
          _
        // Predicated region
        $region49: #{tpu_custom_call.1} parent=43 // pred_check
          %p397 = pneg %p89
        $region50: #{tpu_custom_call.1} parent=43 // pred_check_branch
          %399 = sbr.rel (%p397) target = $region52
        $region51: #{tpu_custom_call.1} parent=43 // pred_region
          %s400 = sand.u32 %s27, 1
          %s401 = scalar_lea.sflag [#allocation8], %s400
          %s402 = sand.u32 %s79, 1
          %s403 = smul.addr %s402, 64
          %s404 = scalar_lea.vmem [#allocation7], %s403
          %s405 = smul.u32 8, %s35
          %s407 = ssub.s32 1024, 1024
          %408 = vsyncadd %s401, %s407
          %s409 = smul.addr %s405, 2
          %s410 = sadd.s32 %s34, %s409
          %s411 = smul.addr %s410, 128
          %s412 = scalar_lea.hbm %s1, %s411
          %s413 = sshll.u32 %s404, 4
          %s414 = int_to_ptr.vmem [resolvable:$true] %s413
          %419 = dma.hbm_to_vmem [thread:$0]  %s412, 1024, %s414, %s401, 256, 128, 8
        $region52: #{tpu_custom_call.1} parent=43 // pred_fallthru
          _
      $region44: #{tpu_custom_call.1} parent=5 // pred_fallthru
        _
      %p420 = scmp.le.s32.totalorder 1, %s27
      %p421 = scmp.lt.s32.totalorder %s27, 5
      %p422 = pnand %p420, %p421
      %p423 = pneg %p422
      // Predicated region
      $region53: #{tpu_custom_call.1} parent=5 // pred_check
        _
      $region54: #{tpu_custom_call.1} parent=5 // pred_check_branch
        %425 = sbr.rel (%p422) target = $region56
      $region55: #{tpu_custom_call.1} parent=5 // pred_region
        %s426 = ssub.s32 %s27, 1
        %s427 = sand.u32 %s54, 1
        %s428 = scalar_lea.sflag [#allocation5], %s427
        %s429 = sand.u32 %s54, 1
        %s430 = smul.addr %s429, 64
        %s431 = scalar_lea.vmem [#allocation4], %s430
        // Predicated region
        $region57: #{tpu_custom_call.1} parent=55 // pred_check
          %p432 = pneg %p67
        $region58: #{tpu_custom_call.1} parent=55 // pred_check_branch
          %434 = sbr.rel (%p432) target = $region60
        $region59: #{tpu_custom_call.1} parent=55 // pred_region
          %435 = dma.done %s428, 1024
        $region60: #{tpu_custom_call.1} parent=55 // pred_fallthru
          _
        %s436 = sand.u32 %s32, 1
        %s437 = scalar_lea.sflag [#allocation8], %s436
        %s438 = sand.u32 %s82, 1
        %s439 = smul.addr %s438, 64
        %s440 = scalar_lea.vmem [#allocation7], %s439
        // Predicated region
        $region61: #{tpu_custom_call.1} parent=55 // pred_check
          %p441 = pneg %p95
        $region62: #{tpu_custom_call.1} parent=55 // pred_check_branch
          %443 = sbr.rel (%p441) target = $region64
        $region63: #{tpu_custom_call.1} parent=55 // pred_region
          %444 = dma.done %s437, 1024
        $region64: #{tpu_custom_call.1} parent=55 // pred_fallthru
          _
        // Predicated region
        $region65: #{tpu_custom_call.1} parent=55 // pred_check
          %p445 = pneg %p116
        $region66: #{tpu_custom_call.1} parent=55 // pred_check_branch
          %447 = sbr.rel (%p445) target = $region68
        $region67: #{tpu_custom_call.1} parent=55 // pred_region
          %448 = dma.done [#allocation8], 128
        $region68: #{tpu_custom_call.1} parent=55 // pred_fallthru
          _
        // Predicated region
        $region69: #{tpu_custom_call.1} parent=55 // pred_check
          %p449 = pneg %p137
        $region70: #{tpu_custom_call.1} parent=55 // pred_check_branch
          %451 = sbr.rel (%p449) target = $region72
        $region71: #{tpu_custom_call.1} parent=55 // pred_region
          %452 = dma.done [#allocation11], 256
        $region72: #{tpu_custom_call.1} parent=55 // pred_fallthru
          _
        // Predicated region
        $region73: #{tpu_custom_call.1} parent=55 // pred_check
          %p453 = pneg %p158
        $region74: #{tpu_custom_call.1} parent=55 // pred_check_branch
          %455 = sbr.rel (%p453) target = $region76
        $region75: #{tpu_custom_call.1} parent=55 // pred_region
          %456 = dma.done [#allocation11], 512
        $region76: #{tpu_custom_call.1} parent=55 // pred_fallthru
          _
        // Predicated region
        $region77: #{tpu_custom_call.1} parent=55 // pred_check
          %p457 = pneg %p179
        $region78: #{tpu_custom_call.1} parent=55 // pred_check_branch
          %459 = sbr.rel (%p457) target = $region80
        $region79: #{tpu_custom_call.1} parent=55 // pred_region
          %460 = dma.done [#allocation14], 16
        $region80: #{tpu_custom_call.1} parent=55 // pred_fallthru
          _
        // Predicated region
        $region81: #{tpu_custom_call.1} parent=55 // pred_check
          %p461 = pneg %p200
        $region82: #{tpu_custom_call.1} parent=55 // pred_check_branch
          %463 = sbr.rel (%p461) target = $region84
        $region83: #{tpu_custom_call.1} parent=55 // pred_region
          %464 = dma.done [#allocation14], 512
        $region84: #{tpu_custom_call.1} parent=55 // pred_fallthru
          _
        // Predicated region
        $region85: #{tpu_custom_call.1} parent=55 // pred_check
          %p465 = pneg %p221
        $region86: #{tpu_custom_call.1} parent=55 // pred_check_branch
          %467 = sbr.rel (%p465) target = $region88
        $region87: #{tpu_custom_call.1} parent=55 // pred_region
          %468 = dma.done [#allocation17], 512
        $region88: #{tpu_custom_call.1} parent=55 // pred_fallthru
          _
        // Predicated region
        $region89: #{tpu_custom_call.1} parent=55 // pred_check
          %p469 = pneg %p242
        $region90: #{tpu_custom_call.1} parent=55 // pred_check_branch
          %471 = sbr.rel (%p469) target = $region92
        $region91: #{tpu_custom_call.1} parent=55 // pred_region
          %472 = dma.done [#allocation17], 16
        $region92: #{tpu_custom_call.1} parent=55 // pred_fallthru
          _
        %s473 = sand.u32 %s54, 1
        %s474 = scalar_lea.sflag [#allocation5], %s473
        %s475 = sand.u32 %s54, 1
        %s476 = smul.addr %s475, 64
        %s477 = scalar_lea.vmem [#allocation4], %s476
        %p478 = pneg %p67
        %p479 = pneg %p64
        %s480 = sand.u32 %s32, 1
        %s481 = scalar_lea.sflag [#allocation8], %s480
        %s482 = sand.u32 %s82, 1
        %s483 = smul.addr %s482, 64
        %s484 = scalar_lea.vmem [#allocation7], %s483
        %p485 = pneg %p95
        %p486 = pneg %p92
        %p487 = pneg %p116
        %p488 = pneg %p113
        %p489 = pneg %p137
        %p490 = pneg %p134
        %p491 = pneg %p158
        %p492 = pneg %p155
        %p493 = pneg %p179
        %p494 = pneg %p176
        %p495 = pneg %p200
        %p496 = pneg %p197
        %p497 = pneg %p221
        %p498 = pneg %p218
        %p499 = pneg %p242
        %p500 = pneg %p239
        %p501 = pneg %p270
        %p502 = pneg %p267
        %s503 = sand.u32 %s257, 1
        %s504 = scalar_lea.sflag [#allocation6], %s503
        %s505 = sand.u32 %s257, 1
        %s506 = smul.addr %s505, 64
        %s507 = scalar_lea.vmem [#allocation19], %s506
        %s508 = smul.u32 8, %s37
        %s509 = smul.u32 8, %s37
        %s510 = smul.u32 8, %s37
        %p511 = scmp.eq.s32.totalorder %s37, 0
        // Predicated region
        $region93: #{tpu_custom_call.1} parent=55 // pred_check
          %p512 = pneg %p511
        $region94: #{tpu_custom_call.1} parent=55 // pred_check_branch
          %514 = sbr.rel (%p512) target = $region96
        $region95: #{tpu_custom_call.1} parent=55 // pred_region
          %vm515 = vcmask 261120
          %516 = vst.msk [vmem:[#allocation3] sm:$0xff] %vm515, 0.0
          %517 = vst.msk [vmem:[#allocation3 + $0x8] sm:$0xff] %vm515, 0.0
        $region96: #{tpu_custom_call.1} parent=55 // pred_fallthru
          _
        %v518 = vld [vmem:[%s431] sm:$0xff]
        %v519 = vld [vmem:[%s431 + $0x8] sm:$0xff]
        %v520 = vld [vmem:[%s431 + $0x10] sm:$0xff]
        %v521 = vld [vmem:[%s431 + $0x18] sm:$0xff]
        %v522 = vld [vmem:[%s431 + $0x20] sm:$0xff]
        %v523 = vld [vmem:[%s431 + $0x28] sm:$0xff]
        %v524 = vld [vmem:[%s431 + $0x30] sm:$0xff]
        %v525 = vld [vmem:[%s431 + $0x38] sm:$0xff]
        %v526 = vld [vmem:[%s440] sm:$0xff]
        %v527 = vld [vmem:[%s440 + $0x8] sm:$0xff]
        %v528 = vld [vmem:[%s440 + $0x10] sm:$0xff]
        %v529 = vld [vmem:[%s440 + $0x18] sm:$0xff]
        %v530 = vld [vmem:[%s440 + $0x20] sm:$0xff]
        %v531 = vld [vmem:[%s440 + $0x28] sm:$0xff]
        %v532 = vld [vmem:[%s440 + $0x30] sm:$0xff]
        %v533 = vld [vmem:[%s440 + $0x38] sm:$0xff]
        %v534 = vld [vmem:[#allocation9] sm:$0x1f]
        %536 = vset.pattern.permute.xlu0 0
        %537 = vperm.xlu0 %536, %v526
        %v538 = vpop.permute.xlu0 %537
        %541 = vset.pattern.permute.xlu0 0
        %542 = vperm.xlu0 %541, %v527
        %v543 = vpop.permute.xlu0 %542
        %546 = vset.pattern.permute.xlu0 0
        %547 = vperm.xlu0 %546, %v528
        %v548 = vpop.permute.xlu0 %547
        %551 = vset.pattern.permute.xlu0 0
        %552 = vperm.xlu0 %551, %v529
        %v553 = vpop.permute.xlu0 %552
        %556 = vset.pattern.permute.xlu0 0
        %557 = vperm.xlu0 %556, %v530
        %v558 = vpop.permute.xlu0 %557
        %561 = vset.pattern.permute.xlu0 0
        %562 = vperm.xlu0 %561, %v531
        %v563 = vpop.permute.xlu0 %562
        %566 = vset.pattern.permute.xlu0 0
        %567 = vperm.xlu0 %566, %v532
        %v568 = vpop.permute.xlu0 %567
        %571 = vset.pattern.permute.xlu0 0
        %572 = vperm.xlu0 %571, %v533
        %v573 = vpop.permute.xlu0 %572
        %v575 = vlaneseq
        %v576 = vshrl.u32 %v575, 7
        %v577 = vsub.s32 0, %v576
        %v578 = vrot.slane %v534, %v577
        %v579 = vmul.f32 %v538, %v578
        %v580 = vmul.f32 %v543, %v578
        %v581 = vmul.f32 %v548, %v578
        %v582 = vmul.f32 %v553, %v578
        %v583 = vmul.f32 %v558, %v578
        %v584 = vmul.f32 %v563, %v578
        %v585 = vmul.f32 %v568, %v578
        %v586 = vmul.f32 %v573, %v578
        %v587 = vadd.f32 %v518, %v579
        %v588 = vadd.f32 %v519, %v580
        %v589 = vadd.f32 %v520, %v581
        %v590 = vadd.f32 %v521, %v582
        %v591 = vadd.f32 %v522, %v583
        %v592 = vadd.f32 %v523, %v584
        %v593 = vadd.f32 %v524, %v585
        %v594 = vadd.f32 %v525, %v586
        %595 = vset.pattern.permute.xlu0 1
        %596 = vperm.xlu0 %595, %v526
        %v597 = vpop.permute.xlu0 %596
        %599 = vset.pattern.permute.xlu0 1
        %600 = vperm.xlu0 %599, %v527
        %v601 = vpop.permute.xlu0 %600
        %603 = vset.pattern.permute.xlu0 1
        %604 = vperm.xlu0 %603, %v528
        %v605 = vpop.permute.xlu0 %604
        %607 = vset.pattern.permute.xlu0 1
        %608 = vperm.xlu0 %607, %v529
        %v609 = vpop.permute.xlu0 %608
        %611 = vset.pattern.permute.xlu0 1
        %612 = vperm.xlu0 %611, %v530
        %v613 = vpop.permute.xlu0 %612
        %615 = vset.pattern.permute.xlu0 1
        %616 = vperm.xlu0 %615, %v531
        %v617 = vpop.permute.xlu0 %616
        %619 = vset.pattern.permute.xlu0 1
        %620 = vperm.xlu0 %619, %v532
        %v621 = vpop.permute.xlu0 %620
        %623 = vset.pattern.permute.xlu0 1
        %624 = vperm.xlu0 %623, %v533
        %v625 = vpop.permute.xlu0 %624
        %v627 = vlaneseq
        %v628 = vshrl.u32 %v627, 7
        %v629 = vsub.s32 1, %v628
        %v630 = vrot.slane %v534, %v629
        %v631 = vmul.f32 %v597, %v630
        %v632 = vmul.f32 %v601, %v630
        %v633 = vmul.f32 %v605, %v630
        %v634 = vmul.f32 %v609, %v630
        %v635 = vmul.f32 %v613, %v630
        %v636 = vmul.f32 %v617, %v630
        %v637 = vmul.f32 %v621, %v630
        %v638 = vmul.f32 %v625, %v630
        %v639 = vadd.f32 %v587, %v631
        %v640 = vadd.f32 %v588, %v632
        %v641 = vadd.f32 %v589, %v633
        %v642 = vadd.f32 %v590, %v634
        %v643 = vadd.f32 %v591, %v635
        %v644 = vadd.f32 %v592, %v636
        %v645 = vadd.f32 %v593, %v637
        %v646 = vadd.f32 %v594, %v638
        %647 = vset.pattern.permute.xlu0 2
        %648 = vperm.xlu0 %647, %v526
        %v649 = vpop.permute.xlu0 %648
        %651 = vset.pattern.permute.xlu0 2
        %652 = vperm.xlu0 %651, %v527
        %v653 = vpop.permute.xlu0 %652
        %655 = vset.pattern.permute.xlu0 2
        %656 = vperm.xlu0 %655, %v528
        %v657 = vpop.permute.xlu0 %656
        %659 = vset.pattern.permute.xlu0 2
        %660 = vperm.xlu0 %659, %v529
        %v661 = vpop.permute.xlu0 %660
        %663 = vset.pattern.permute.xlu0 2
        %664 = vperm.xlu0 %663, %v530
        %v665 = vpop.permute.xlu0 %664
        %667 = vset.pattern.permute.xlu0 2
        %668 = vperm.xlu0 %667, %v531
        %v669 = vpop.permute.xlu0 %668
        %671 = vset.pattern.permute.xlu0 2
        %672 = vperm.xlu0 %671, %v532
        %v673 = vpop.permute.xlu0 %672
        %675 = vset.pattern.permute.xlu0 2
        %676 = vperm.xlu0 %675, %v533
        %v677 = vpop.permute.xlu0 %676
        %v679 = vlaneseq
        %v680 = vshrl.u32 %v679, 7
        %v681 = vsub.s32 2, %v680
        %v682 = vrot.slane %v534, %v681
        %v683 = vmul.f32 %v649, %v682
        %v684 = vmul.f32 %v653, %v682
        %v685 = vmul.f32 %v657, %v682
        %v686 = vmul.f32 %v661, %v682
        %v687 = vmul.f32 %v665, %v682
        %v688 = vmul.f32 %v669, %v682
        %v689 = vmul.f32 %v673, %v682
        %v690 = vmul.f32 %v677, %v682
        %v691 = vadd.f32 %v639, %v683
        %v692 = vadd.f32 %v640, %v684
        %v693 = vadd.f32 %v641, %v685
        %v694 = vadd.f32 %v642, %v686
        %v695 = vadd.f32 %v643, %v687
        %v696 = vadd.f32 %v644, %v688
        %v697 = vadd.f32 %v645, %v689
        %v698 = vadd.f32 %v646, %v690
        %699 = vset.pattern.permute.xlu0 3
        %700 = vperm.xlu0 %699, %v526
        %v701 = vpop.permute.xlu0 %700
        %703 = vset.pattern.permute.xlu0 3
        %704 = vperm.xlu0 %703, %v527
        %v705 = vpop.permute.xlu0 %704
        %707 = vset.pattern.permute.xlu0 3
        %708 = vperm.xlu0 %707, %v528
        %v709 = vpop.permute.xlu0 %708
        %711 = vset.pattern.permute.xlu0 3
        %712 = vperm.xlu0 %711, %v529
        %v713 = vpop.permute.xlu0 %712
        %715 = vset.pattern.permute.xlu0 3
        %716 = vperm.xlu0 %715, %v530
        %v717 = vpop.permute.xlu0 %716
        %719 = vset.pattern.permute.xlu0 3
        %720 = vperm.xlu0 %719, %v531
        %v721 = vpop.permute.xlu0 %720
        %723 = vset.pattern.permute.xlu0 3
        %724 = vperm.xlu0 %723, %v532
        %v725 = vpop.permute.xlu0 %724
        %727 = vset.pattern.permute.xlu0 3
        %728 = vperm.xlu0 %727, %v533
        %v729 = vpop.permute.xlu0 %728
        %v731 = vlaneseq
        %v732 = vshrl.u32 %v731, 7
        %v733 = vsub.s32 3, %v732
        %v734 = vrot.slane %v534, %v733
        %v735 = vmul.f32 %v701, %v734
        %v736 = vmul.f32 %v705, %v734
        %v737 = vmul.f32 %v709, %v734
        %v738 = vmul.f32 %v713, %v734
        %v739 = vmul.f32 %v717, %v734
        %v740 = vmul.f32 %v721, %v734
        %v741 = vmul.f32 %v725, %v734
        %v742 = vmul.f32 %v729, %v734
        %v743 = vadd.f32 %v691, %v735
        %v744 = vadd.f32 %v692, %v736
        %v745 = vadd.f32 %v693, %v737
        %v746 = vadd.f32 %v694, %v738
        %v747 = vadd.f32 %v695, %v739
        %v748 = vadd.f32 %v696, %v740
        %v749 = vadd.f32 %v697, %v741
        %v750 = vadd.f32 %v698, %v742
        %751 = vset.pattern.permute.xlu0 4
        %752 = vperm.xlu0 %751, %v526
        %v753 = vpop.permute.xlu0 %752
        %755 = vset.pattern.permute.xlu0 4
        %756 = vperm.xlu0 %755, %v527
        %v757 = vpop.permute.xlu0 %756
        %759 = vset.pattern.permute.xlu0 4
        %760 = vperm.xlu0 %759, %v528
        %v761 = vpop.permute.xlu0 %760
        %763 = vset.pattern.permute.xlu0 4
        %764 = vperm.xlu0 %763, %v529
        %v765 = vpop.permute.xlu0 %764
        %767 = vset.pattern.permute.xlu0 4
        %768 = vperm.xlu0 %767, %v530
        %v769 = vpop.permute.xlu0 %768
        %771 = vset.pattern.permute.xlu0 4
        %772 = vperm.xlu0 %771, %v531
        %v773 = vpop.permute.xlu0 %772
        %775 = vset.pattern.permute.xlu0 4
        %776 = vperm.xlu0 %775, %v532
        %v777 = vpop.permute.xlu0 %776
        %779 = vset.pattern.permute.xlu0 4
        %780 = vperm.xlu0 %779, %v533
        %v781 = vpop.permute.xlu0 %780
        %v783 = vlaneseq
        %v784 = vshrl.u32 %v783, 7
        %v785 = vsub.s32 4, %v784
        %v786 = vrot.slane %v534, %v785
        %v787 = vmul.f32 %v753, %v786
        %v788 = vmul.f32 %v757, %v786
        %v789 = vmul.f32 %v761, %v786
        %v790 = vmul.f32 %v765, %v786
        %v791 = vmul.f32 %v769, %v786
        %v792 = vmul.f32 %v773, %v786
        %v793 = vmul.f32 %v777, %v786
        %v794 = vmul.f32 %v781, %v786
        %v795 = vadd.f32 %v743, %v787
        %v796 = vadd.f32 %v744, %v788
        %v797 = vadd.f32 %v745, %v789
        %v798 = vadd.f32 %v746, %v790
        %v799 = vadd.f32 %v747, %v791
        %v800 = vadd.f32 %v748, %v792
        %v801 = vadd.f32 %v749, %v793
        %v802 = vadd.f32 %v750, %v794
        %vm803 = vcmask 130048
        %804 = vst.msk [vmem:[#allocation2] sm:$0xff] %vm803, %v795
        %805 = vst.msk [vmem:[#allocation2 + $0x8] sm:$0xff] %vm803, %v796
        %806 = vst.msk [vmem:[#allocation2 + $0x10] sm:$0xff] %vm803, %v797
        %807 = vst.msk [vmem:[#allocation2 + $0x18] sm:$0xff] %vm803, %v798
        %808 = vst.msk [vmem:[#allocation2 + $0x20] sm:$0xff] %vm803, %v799
        %809 = vst.msk [vmem:[#allocation2 + $0x28] sm:$0xff] %vm803, %v800
        %810 = vst.msk [vmem:[#allocation2 + $0x30] sm:$0xff] %vm803, %v801
        %811 = vst.msk [vmem:[#allocation2 + $0x38] sm:$0xff] %vm803, %v802
        %v812 = vld [vmem:[#allocation10] sm:$0xff]
        %v813 = vld [vmem:[#allocation10 + $0x8] sm:$0xff]
        %v814 = vld [vmem:[#allocation15] sm:$0xff]
        %v815 = vld [vmem:[#allocation15 + $0x8] sm:$0xff]
        %v816 = vld [vmem:[#allocation15 + $0x10] sm:$0xff]
        %v817 = vld [vmem:[#allocation15 + $0x18] sm:$0xff]
        %v818 = vld [vmem:[#allocation12] sm:$0xff]
        %v819 = vld [vmem:[#allocation12 + $0x8] sm:$0xff]
        %v820 = vld [vmem:[#allocation12 + $0x10] sm:$0xff]
        %v821 = vld [vmem:[#allocation12 + $0x18] sm:$0xff]
        %v822 = vld [vmem:[#allocation16] sm:$0xff]
        %v823 = vld [vmem:[#allocation16 + $0x8] sm:$0xff]
        %v824 = vld [vmem:[#allocation16 + $0x10] sm:$0xff]
        %v825 = vld [vmem:[#allocation16 + $0x18] sm:$0xff]
        %v826 = vld [vmem:[#allocation13] sm:$0x1]
        %v828 = vlaneseq
        %v829 = vshrl.u32 %v828, 7
        %v830 = vsub.s32 0, %v829
        %v831 = vrot.slane %v826, %v830
        %v833 = vld [vmem:[#allocation18] sm:$0x1]
        %v835 = vlaneseq
        %v836 = vshrl.u32 %v835, 7
        %v837 = vsub.s32 0, %v836
        %v838 = vrot.slane %v833, %v837
        %v840 = vld [vmem:[#allocation3] sm:$0xff]
        %s841 = scalar_lea.vmem [#allocation3], 8
        %v842 = vld [vmem:[%s841] sm:$0xff]
        loop: start=0, step=1, limit=8
        $region97: #{tpu_custom_call.1} parent=55 // loop_pre_header
          _
        $region98: #{tpu_custom_call.1} parent=55 // loop_header
          %s844 = sphi 0, %s848
          %p845 = scmp.ge.s32.totalorder %s844, 8
          %v849 = vphi %v840, %v1002
          %v850 = vphi %v842, %v1150
        $region99: #{tpu_custom_call.1} parent=55 // loop_header_branch
          %847 = sbr.rel (%p845) target = $region103
        $region100: #{tpu_custom_call.1} parent=55 // loop_body
          %s851 = smul.u32 %s844, 8
          %s852 = scalar_lea.vmem [#allocation2], %s851
          %v853 = vld [vmem:[%s852] sm:$0xff]
          %vm854 = vcmask 261120
          %v856 = vsel %vm854, %v849, 0
          %858 = vmatprep.subr.mxu0 0.0
          %859 = vmatpush1.msra.mxu0 %v818
          %860 = vmatprep.subr.mxu0 0.0
          %861 = vmatpush1.msra.mxu0 %v819
          %862 = vmatprep.subr.mxu0 0.0
          %863 = vmatpush1.msra.mxu0 %v820
          %864 = vmatprep.subr.mxu0 0.0
          %865 = vmatpush1.msra.mxu0 %v821
          %866 = vmatprep.subr.mxu0 0.0
          %867 = vmatpush1.msra.mxu0 0.0
          %868 = vmatprep.subr.mxu0 0.0
          %869 = vmatpush1.msra.mxu0 0.0
          %870 = vmatprep.subr.mxu0 0.0
          %871 = vmatpush1.msra.mxu0 0.0
          %872 = vmatprep.subr.mxu0 0.0
          %873 = vmatpush1.msra.mxu0 0.0
          %874 = vmatprep.subr.mxu0 0.0
          %875 = vmatpush1.msra.mxu0 0.0
          %876 = vmatprep.subr.mxu0 0.0
          %877 = vmatpush1.msra.mxu0 0.0
          %878 = vmatprep.subr.mxu0 0.0
          %879 = vmatpush1.msra.mxu0 0.0
          %880 = vmatprep.subr.mxu0 0.0
          %881 = vmatpush1.msra.mxu0 0.0
          %882 = vmatprep.subr.mxu0 0.0
          %883 = vmatpush1.msra.mxu0 0.0
          %884 = vmatprep.subr.mxu0 0.0
          %885 = vmatpush1.msra.mxu0 0.0
          %886 = vmatprep.subr.mxu0 0.0
          %887 = vmatpush1.msra.mxu0 0.0
          %888 = vmatprep.subr.mxu0 0.0
          %889 = vmatpush1.msra.mxu0 0.0
          %890 = vmatprep.subr.mxu0 0.0
          %891 = vmatpush1.msra.mxu0 0.0
          %892 = vmatprep.subr.mxu0 0.0
          %893 = vmatpush1.msra.mxu0 0.0
          %894 = vmatprep.subr.mxu0 0.0
          %895 = vmatpush1.msra.mxu0 0.0
          %896 = vmatprep.subr.mxu0 0.0
          %897 = vmatpush1.msra.mxu0 0.0
          %898 = vmatprep.subr.mxu0 0.0
          %899 = vmatpush1.msra.mxu0 0.0
          %900 = vmatprep.subr.mxu0 0.0
          %901 = vmatpush1.msra.mxu0 0.0
          %902 = vmatprep.subr.mxu0 0.0
          %903 = vmatpush1.msra.mxu0 0.0
          %904 = vmatprep.subr.mxu0 0.0
          %905 = vmatpush1.msra.mxu0 0.0
          %906 = vmatprep.subr.mxu0 0.0
          %907 = vmatpush1.msra.mxu0 0.0
          %908 = vmatprep.subr.mxu0 0.0
          %909 = vmatpush1.msra.mxu0 0.0
          %910 = vmatprep.subr.mxu0 0.0
          %911 = vmatpush1.msra.mxu0 0.0
          %912 = vmatprep.subr.mxu0 0.0
          %913 = vmatpush1.msra.mxu0 0.0
          %914 = vmatprep.subr.mxu0 0.0
          %915 = vmatpush1.msra.mxu0 0.0
          %916 = vmatprep.subr.mxu0 0.0
          %917 = vmatpush1.msra.mxu0 0.0
          %918 = vmatprep.subr.mxu0 0.0
          %919 = vmatpush1.msra.mxu0 0.0
          %920 = vmatprep.subr.mxu0 0.0
          %921 = vmatpush1.msra.mxu0 0.0
          %922 = vmatprep.mubr.f32.mxu0 0.0
          %923 = vmatmul.mubr.f32.gmra.mrb[0].mxu0 %v856
          %v924 = vpop.f32.mrb[0].mxu0
          %v925 = vadd.f32 0.0, %v924
          %v926 = vpop.f32.mrb[0].mxu0
          %927 = vdwg.mxu0
          %v929 = vsel %vm803, %v853, 0
          %931 = vmatprep.subr.mxu0 0.0
          %932 = vmatpush1.msra.mxu0 %v812
          %933 = vmatprep.subr.mxu0 0.0
          %934 = vmatpush1.msra.mxu0 %v813
          %935 = vmatprep.subr.mxu0 0.0
          %936 = vmatpush1.msra.mxu0 0.0
          %937 = vmatprep.subr.mxu0 0.0
          %938 = vmatpush1.msra.mxu0 0.0
          %939 = vmatprep.subr.mxu0 0.0
          %940 = vmatpush1.msra.mxu0 0.0
          %941 = vmatprep.subr.mxu0 0.0
          %942 = vmatpush1.msra.mxu0 0.0
          %943 = vmatprep.subr.mxu0 0.0
          %944 = vmatpush1.msra.mxu0 0.0
          %945 = vmatprep.subr.mxu0 0.0
          %946 = vmatpush1.msra.mxu0 0.0
          %947 = vmatprep.subr.mxu0 0.0
          %948 = vmatpush1.msra.mxu0 0.0
          %949 = vmatprep.subr.mxu0 0.0
          %950 = vmatpush1.msra.mxu0 0.0
          %951 = vmatprep.subr.mxu0 0.0
          %952 = vmatpush1.msra.mxu0 0.0
          %953 = vmatprep.subr.mxu0 0.0
          %954 = vmatpush1.msra.mxu0 0.0
          %955 = vmatprep.subr.mxu0 0.0
          %956 = vmatpush1.msra.mxu0 0.0
          %957 = vmatprep.subr.mxu0 0.0
          %958 = vmatpush1.msra.mxu0 0.0
          %959 = vmatprep.subr.mxu0 0.0
          %960 = vmatpush1.msra.mxu0 0.0
          %961 = vmatprep.subr.mxu0 0.0
          %962 = vmatpush1.msra.mxu0 0.0
          %963 = vmatprep.subr.mxu0 0.0
          %964 = vmatpush1.msra.mxu0 0.0
          %965 = vmatprep.subr.mxu0 0.0
          %966 = vmatpush1.msra.mxu0 0.0
          %967 = vmatprep.subr.mxu0 0.0
          %968 = vmatpush1.msra.mxu0 0.0
          %969 = vmatprep.subr.mxu0 0.0
          %970 = vmatpush1.msra.mxu0 0.0
          %971 = vmatprep.subr.mxu0 0.0
          %972 = vmatpush1.msra.mxu0 0.0
          %973 = vmatprep.subr.mxu0 0.0
          %974 = vmatpush1.msra.mxu0 0.0
          %975 = vmatprep.subr.mxu0 0.0
          %976 = vmatpush1.msra.mxu0 0.0
          %977 = vmatprep.subr.mxu0 0.0
          %978 = vmatpush1.msra.mxu0 0.0
          %979 = vmatprep.subr.mxu0 0.0
          %980 = vmatpush1.msra.mxu0 0.0
          %981 = vmatprep.subr.mxu0 0.0
          %982 = vmatpush1.msra.mxu0 0.0
          %983 = vmatprep.subr.mxu0 0.0
          %984 = vmatpush1.msra.mxu0 0.0
          %985 = vmatprep.subr.mxu0 0.0
          %986 = vmatpush1.msra.mxu0 0.0
          %987 = vmatprep.subr.mxu0 0.0
          %988 = vmatpush1.msra.mxu0 0.0
          %989 = vmatprep.subr.mxu0 0.0
          %990 = vmatpush1.msra.mxu0 0.0
          %991 = vmatprep.subr.mxu0 0.0
          %992 = vmatpush1.msra.mxu0 0.0
          %993 = vmatprep.subr.mxu0 0.0
          %994 = vmatpush1.msra.mxu0 0.0
          %995 = vmatprep.mubr.f32.mxu0 0.0
          %996 = vmatmul.mubr.f32.gmra.mrb[0].mxu0 %v929
          %v997 = vpop.f32.mrb[0].mxu0
          %v998 = vadd.f32 %v925, %v997
          %v999 = vpop.f32.mrb[0].mxu0
          %1000 = vdwg.mxu0
          %v1001 = vadd.f32 %v998, %v831
          %v1002 = vtanh.pop %v1001
          %v1004 = vsel %vm854, %v850, 0
          %1006 = vmatprep.subr.mxu0 0.0
          %1007 = vmatpush1.msra.mxu0 %v822
          %1008 = vmatprep.subr.mxu0 0.0
          %1009 = vmatpush1.msra.mxu0 %v823
          %1010 = vmatprep.subr.mxu0 0.0
          %1011 = vmatpush1.msra.mxu0 %v824
          %1012 = vmatprep.subr.mxu0 0.0
          %1013 = vmatpush1.msra.mxu0 %v825
          %1014 = vmatprep.subr.mxu0 0.0
          %1015 = vmatpush1.msra.mxu0 0.0
          %1016 = vmatprep.subr.mxu0 0.0
          %1017 = vmatpush1.msra.mxu0 0.0
          %1018 = vmatprep.subr.mxu0 0.0
          %1019 = vmatpush1.msra.mxu0 0.0
          %1020 = vmatprep.subr.mxu0 0.0
          %1021 = vmatpush1.msra.mxu0 0.0
          %1022 = vmatprep.subr.mxu0 0.0
          %1023 = vmatpush1.msra.mxu0 0.0
          %1024 = vmatprep.subr.mxu0 0.0
          %1025 = vmatpush1.msra.mxu0 0.0
          %1026 = vmatprep.subr.mxu0 0.0
          %1027 = vmatpush1.msra.mxu0 0.0
          %1028 = vmatprep.subr.mxu0 0.0
          %1029 = vmatpush1.msra.mxu0 0.0
          %1030 = vmatprep.subr.mxu0 0.0
          %1031 = vmatpush1.msra.mxu0 0.0
          %1032 = vmatprep.subr.mxu0 0.0
          %1033 = vmatpush1.msra.mxu0 0.0
          %1034 = vmatprep.subr.mxu0 0.0
          %1035 = vmatpush1.msra.mxu0 0.0
          %1036 = vmatprep.subr.mxu0 0.0
          %1037 = vmatpush1.msra.mxu0 0.0
          %1038 = vmatprep.subr.mxu0 0.0
          %1039 = vmatpush1.msra.mxu0 0.0
          %1040 = vmatprep.subr.mxu0 0.0
          %1041 = vmatpush1.msra.mxu0 0.0
          %1042 = vmatprep.subr.mxu0 0.0
          %1043 = vmatpush1.msra.mxu0 0.0
          %1044 = vmatprep.subr.mxu0 0.0
          %1045 = vmatpush1.msra.mxu0 0.0
          %1046 = vmatprep.subr.mxu0 0.0
          %1047 = vmatpush1.msra.mxu0 0.0
          %1048 = vmatprep.subr.mxu0 0.0
          %1049 = vmatpush1.msra.mxu0 0.0
          %1050 = vmatprep.subr.mxu0 0.0
          %1051 = vmatpush1.msra.mxu0 0.0
          %1052 = vmatprep.subr.mxu0 0.0
          %1053 = vmatpush1.msra.mxu0 0.0
          %1054 = vmatprep.subr.mxu0 0.0
          %1055 = vmatpush1.msra.mxu0 0.0
          %1056 = vmatprep.subr.mxu0 0.0
          %1057 = vmatpush1.msra.mxu0 0.0
          %1058 = vmatprep.subr.mxu0 0.0
          %1059 = vmatpush1.msra.mxu0 0.0
          %1060 = vmatprep.subr.mxu0 0.0
          %1061 = vmatpush1.msra.mxu0 0.0
          %1062 = vmatprep.subr.mxu0 0.0
          %1063 = vmatpush1.msra.mxu0 0.0
          %1064 = vmatprep.subr.mxu0 0.0
          %1065 = vmatpush1.msra.mxu0 0.0
          %1066 = vmatprep.subr.mxu0 0.0
          %1067 = vmatpush1.msra.mxu0 0.0
          %1068 = vmatprep.subr.mxu0 0.0
          %1069 = vmatpush1.msra.mxu0 0.0
          %1070 = vmatprep.mubr.f32.mxu0 0.0
          %1071 = vmatmul.mubr.f32.gmra.mrb[0].mxu0 %v1004
          %v1072 = vpop.f32.mrb[0].mxu0
          %v1073 = vadd.f32 0.0, %v1072
          %v1074 = vpop.f32.mrb[0].mxu0
          %1075 = vdwg.mxu0
          %v1077 = vsel %vm854, %v1002, 0
          %1079 = vmatprep.subr.mxu0 0.0
          %1080 = vmatpush1.msra.mxu0 %v814
          %1081 = vmatprep.subr.mxu0 0.0
          %1082 = vmatpush1.msra.mxu0 %v815
          %1083 = vmatprep.subr.mxu0 0.0
          %1084 = vmatpush1.msra.mxu0 %v816
          %1085 = vmatprep.subr.mxu0 0.0
          %1086 = vmatpush1.msra.mxu0 %v817
          %1087 = vmatprep.subr.mxu0 0.0
          %1088 = vmatpush1.msra.mxu0 0.0
          %1089 = vmatprep.subr.mxu0 0.0
          %1090 = vmatpush1.msra.mxu0 0.0
          %1091 = vmatprep.subr.mxu0 0.0
          %1092 = vmatpush1.msra.mxu0 0.0
          %1093 = vmatprep.subr.mxu0 0.0
          %1094 = vmatpush1.msra.mxu0 0.0
          %1095 = vmatprep.subr.mxu0 0.0
          %1096 = vmatpush1.msra.mxu0 0.0
          %1097 = vmatprep.subr.mxu0 0.0
          %1098 = vmatpush1.msra.mxu0 0.0
          %1099 = vmatprep.subr.mxu0 0.0
          %1100 = vmatpush1.msra.mxu0 0.0
          %1101 = vmatprep.subr.mxu0 0.0
          %1102 = vmatpush1.msra.mxu0 0.0
          %1103 = vmatprep.subr.mxu0 0.0
          %1104 = vmatpush1.msra.mxu0 0.0
          %1105 = vmatprep.subr.mxu0 0.0
          %1106 = vmatpush1.msra.mxu0 0.0
          %1107 = vmatprep.subr.mxu0 0.0
          %1108 = vmatpush1.msra.mxu0 0.0
          %1109 = vmatprep.subr.mxu0 0.0
          %1110 = vmatpush1.msra.mxu0 0.0
          %1111 = vmatprep.subr.mxu0 0.0
          %1112 = vmatpush1.msra.mxu0 0.0
          %1113 = vmatprep.subr.mxu0 0.0
          %1114 = vmatpush1.msra.mxu0 0.0
          %1115 = vmatprep.subr.mxu0 0.0
          %1116 = vmatpush1.msra.mxu0 0.0
          %1117 = vmatprep.subr.mxu0 0.0
          %1118 = vmatpush1.msra.mxu0 0.0
          %1119 = vmatprep.subr.mxu0 0.0
          %1120 = vmatpush1.msra.mxu0 0.0
          %1121 = vmatprep.subr.mxu0 0.0
          %1122 = vmatpush1.msra.mxu0 0.0
          %1123 = vmatprep.subr.mxu0 0.0
          %1124 = vmatpush1.msra.mxu0 0.0
          %1125 = vmatprep.subr.mxu0 0.0
          %1126 = vmatpush1.msra.mxu0 0.0
          %1127 = vmatprep.subr.mxu0 0.0
          %1128 = vmatpush1.msra.mxu0 0.0
          %1129 = vmatprep.subr.mxu0 0.0
          %1130 = vmatpush1.msra.mxu0 0.0
          %1131 = vmatprep.subr.mxu0 0.0
          %1132 = vmatpush1.msra.mxu0 0.0
          %1133 = vmatprep.subr.mxu0 0.0
          %1134 = vmatpush1.msra.mxu0 0.0
          %1135 = vmatprep.subr.mxu0 0.0
          %1136 = vmatpush1.msra.mxu0 0.0
          %1137 = vmatprep.subr.mxu0 0.0
          %1138 = vmatpush1.msra.mxu0 0.0
          %1139 = vmatprep.subr.mxu0 0.0
          %1140 = vmatpush1.msra.mxu0 0.0
          %1141 = vmatprep.subr.mxu0 0.0
          %1142 = vmatpush1.msra.mxu0 0.0
          %1143 = vmatprep.mubr.f32.mxu0 0.0
          %1144 = vmatmul.mubr.f32.gmra.mrb[0].mxu0 %v1077
          %v1145 = vpop.f32.mrb[0].mxu0
          %v1146 = vadd.f32 %v1073, %v1145
          %v1147 = vpop.f32.mrb[0].mxu0
          %1148 = vdwg.mxu0
          %v1149 = vadd.f32 %v1146, %v838
          %v1150 = vtanh.pop %v1149
          %s1151 = scalar_lea.vmem %s507, %s851 [#allocation19]
          %1152 = vst.msk [vmem:[%s1151] sm:$0xff] %vm854, %v1150
        $region101: #{tpu_custom_call.1} parent=55 // loop_footer
          %s848 = sadd.s32 1, %s844
        $region102: #{tpu_custom_call.1} parent=55 // loop_footer_branch
          %843 = sbr.rel target = $region98
        $region103: #{tpu_custom_call.1} parent=55 // loop_exit
          _
        %vm1153 = vcmask 261120
        %1154 = vst.msk [vmem:[#allocation3] sm:$0xff] %vm1153, %v849
        %1155 = vst.msk [vmem:[%s841] sm:$0xff] %vm1153, %v850
        %s1156 = sand.u32 %s257, 1
        %s1157 = scalar_lea.sflag [#allocation6], %s1156
        %s1158 = sand.u32 %s257, 1
        %s1159 = smul.addr %s1158, 64
        %s1160 = scalar_lea.vmem [#allocation19], %s1159
        // Predicated region
        $region104: #{tpu_custom_call.1} parent=55 // pred_check
          %p1161 = pneg %p267
        $region105: #{tpu_custom_call.1} parent=55 // pred_check_branch
          %1163 = sbr.rel (%p1161) target = $region107
        $region106: #{tpu_custom_call.1} parent=55 // pred_region
          %s1164 = smul.u32 8, %s37
          %s1166 = ssub.s32 1024, 1024
          %1167 = vsyncadd %s1157, %s1166
          %s1168 = smul.addr %s1164, 2
          %s1169 = sadd.s32 %s36, %s1168
          %s1170 = smul.addr %s1169, 128
          %s1171 = scalar_lea.hbm %s9, %s1170
          %s1172 = sshll.u32 %s1160, 4
          %s1173 = int_to_ptr.vmem [resolvable:$true] %s1172
          %1178 = dma.vmem_to_hbm [thread:$0]  %s1173, 1024, %s1171, %s1157, 128, 256, 8
        $region107: #{tpu_custom_call.1} parent=55 // pred_fallthru
          _
      $region56: #{tpu_custom_call.1} parent=5 // pred_fallthru
        _
      %p1179 = scmp.le.s32.totalorder 2, %s27
      // Predicated region
      $region108: #{tpu_custom_call.1} parent=5 // pred_check
        %p1180 = pneg %p1179
      $region109: #{tpu_custom_call.1} parent=5 // pred_check_branch
        %1182 = sbr.rel (%p1180) target = $region111
      $region110: #{tpu_custom_call.1} parent=5 // pred_region
        %s1183 = ssub.s32 %s27, 2
        // Predicated region
        $region112: #{tpu_custom_call.1} parent=110 // pred_check
          %p1184 = pneg %p273
        $region113: #{tpu_custom_call.1} parent=110 // pred_check_branch
          %1186 = sbr.rel (%p1184) target = $region115
        $region114: #{tpu_custom_call.1} parent=110 // pred_region
          %s1187 = sand.u32 %s258, 1
          %s1188 = scalar_lea.sflag [#allocation6], %s1187
          %s1189 = sand.u32 %s258, 1
          %s1190 = smul.addr %s1189, 64
          %s1191 = scalar_lea.vmem [#allocation19], %s1190
          %1192 = dma.done %s1188, 1024
        $region115: #{tpu_custom_call.1} parent=110 // pred_fallthru
          _
      $region111: #{tpu_custom_call.1} parent=5 // pred_fallthru
        _
    $region6: #{tpu_custom_call.1} parent=1 // loop_footer
      %s31 = sadd.s32 1, %s27
    $region7: #{tpu_custom_call.1} parent=1 // loop_footer_branch
      %26 = sbr.rel target = $region3
    $region8: #{tpu_custom_call.1} parent=1 // loop_exit
      _
    %1193 = vsyncpa [#allocation5], 1
    %s1194 = scalar_lea.sflag [#allocation5], 1
    %1195 = vsyncpa %s1194, 1
    %1196 = vsyncpa [#allocation8], 1
    %s1197 = scalar_lea.sflag [#allocation8], 1
    %1198 = vsyncpa %s1197, 1
    %1199 = vsyncpa [#allocation11], 1
    %1200 = vsyncpa [#allocation14], 1
    %1201 = vsyncpa [#allocation17], 1
    %1202 = vsyncpa [#allocation6], 1
    %s1203 = scalar_lea.sflag [#allocation6], 1
    %1204 = vsyncpa %s1203, 1

</llo_original>
